<compile_context>
chip_gen: v7x
topology: tpu7x:2x2x1
jax: 0.10.0
libtpu: 0.0.40
codegen_flags: <defaults>
</compile_context>

<pallas_src>
import functools

import jax
import jax.numpy as jnp
import numpy as np
from jax.experimental import pallas as pl
from jax.experimental.pallas import tpu as pltpu


# ----------------------------- Pallas kernel -------------------------------


def _fused_lstm_kernel(*refs, num_layers, seq_len, hidden, batch_pad):
    """Whole forward: `num_layers` stacked LSTMs + final Linear, one invocation.

    refs = (x, {w_ih_t, w_hh_t, b} * L, fc_w, fc_b, out, xproj_scr, hseq_scr)
      x         : (T*B_pad, D_in)      time-major rows, flat
      w_ih_t_l  : (D_in_l, 4H)         W_ih^T
      w_hh_t_l  : (H, 4H)              W_hh^T
      b_l       : (1, 4H)              b_ih + b_hh
      fc_w      : (H, O)               final Linear weight (pre-transposed)
      fc_b      : (1, O)               final Linear bias
      out       : (B_pad, O)
      xproj_scr : (T*B_pad, 4H) VMEM   hoisted input projection (reused per layer)
      hseq_scr  : (T*B_pad, H)  VMEM   inter-layer hidden sequence (never to HBM)
    """
    x_ref = refs[0]
    layer_refs = refs[1:1 + 3 * num_layers]
    fc_w_ref = refs[1 + 3 * num_layers]
    fc_b_ref = refs[2 + 3 * num_layers]
    out_ref = refs[3 + 3 * num_layers]
    xproj_scr = refs[4 + 3 * num_layers]
    hseq_scr = refs[5 + 3 * num_layers]

    H = hidden
    T = seq_len
    B = batch_pad

    def run_layer(layer_idx):
        w_ih_t = layer_refs[3 * layer_idx][...]       # (D_in, 4H)
        w_hh_t = layer_refs[3 * layer_idx + 1][...]   # (H, 4H)
        b = layer_refs[3 * layer_idx + 2][...]        # (1, 4H)
        is_first = layer_idx == 0
        is_last = layer_idx == num_layers - 1

        # Hoisted input projection: one well-shaped MXU dot covering all T
        # timesteps, bias folded in here (no per-step concatenate / VPU add).
        x_flat = x_ref[...] if is_first else hseq_scr[...]   # (T*B, D_in)
        xproj_scr[...] = (
            jnp.dot(x_flat, w_ih_t, preferred_element_type=jnp.float32) + b)

        def body(t, carry):
            h, c = carry
            row = pl.multiple_of(t * B, 8)            # sublane-aligned row slice
            gates = (xproj_scr[pl.ds(row, B), :]
                     + jnp.dot(h, w_hh_t, preferred_element_type=jnp.float32))
            # PyTorch gate order: i, f, g, o.
            # TODO(synk): H=32 makes each gate a sub-vreg lane slice; a model
            # with H a multiple of 128 avoids per-step lane-shuffle overhead.
            i_g = jax.nn.sigmoid(gates[:, 0 * H:1 * H])
            f_g = jax.nn.sigmoid(gates[:, 1 * H:2 * H])
            g_g = jnp.tanh(gates[:, 2 * H:3 * H])
            o_g = jax.nn.sigmoid(gates[:, 3 * H:4 * H])
            c_new = f_g * c + i_g * g_g
            h_new = o_g * jnp.tanh(c_new)
            if not is_last:
                hseq_scr[pl.ds(row, B), :] = h_new    # feeds next layer; VMEM only
            return (h_new, c_new)

        init = (jnp.zeros((B, H), jnp.float32), jnp.zeros((B, H), jnp.float32))
        h_last, _ = jax.lax.fori_loop(0, T, body, init, unroll=min(T, 8))
        return h_last

    h_last = None
    for li in range(num_layers):
        h_last = run_layer(li)

    # TODO(synk): O=4 output is lane-sparse (masked vst); pad to a lane-dense
    # slab and slice in the wrapper if output_size ever grows.
    out_ref[...] = (
        jnp.dot(h_last, fc_w_ref[...], preferred_element_type=jnp.float32)
        + fc_b_ref[...]).astype(out_ref.dtype)


# ------------------------------- wrappers -----------------------------------


def lstm_forward(x, params):
    """x: (B, T, input_size), batch-first like the PyTorch module."""
    # TODO(synk): `conditional` branch (label_fc + concat) is dead by default and
    # references undefined attributes in the reference module; not implemented.
    B, T, D_in = x.shape
    layers = params["lstm"]
    num_layers = len(layers)
    H = layers[0][1].shape[0]            # w_hh_t is (H, 4H)
    O = params["fc_w"].shape[1]
    B_pad = ((B + 7) // 8) * 8           # full sublane group

    x_tm = jnp.transpose(x, (1, 0, 2)).astype(jnp.float32)   # (T, B, D_in)
    if B_pad != B:
        x_tm = jnp.pad(x_tm, ((0, 0), (0, B_pad - B), (0, 0)))
    x_flat = x_tm.reshape(T * B_pad, D_in)                    # flat time-major rows

    inputs = [x_flat]
    for (w_ih_t, w_hh_t, b) in layers:
        inputs += [w_ih_t, w_hh_t, b]
    inputs += [params["fc_w"], params["fc_b"].reshape(1, O)]

    kernel = functools.partial(
        _fused_lstm_kernel, num_layers=num_layers, seq_len=T, hidden=H,
        batch_pad=B_pad)
    hseq_rows = T * B_pad if num_layers > 1 else B_pad       # unused if single layer
    out = pl.pallas_call(
        kernel,
        out_shape=jax.ShapeDtypeStruct((B_pad, O), jnp.float32),
        scratch_shapes=[
            pltpu.VMEM((T * B_pad, 4 * H), jnp.float32),     # hoisted Xproj
            pltpu.VMEM((hseq_rows, H), jnp.float32),         # inter-layer hidden seq
        ],
        compiler_params=pltpu.CompilerParams(
            vmem_limit_bytes=32 * 1024 * 1024),
    )(*inputs)
    return out[:B]


def init_params(key, input_size, hidden_size, num_layers, output_size):
    """PyTorch-style uniform(-1/sqrt(H), 1/sqrt(H)) init, deterministic."""
    k = 1.0 / np.sqrt(hidden_size)
    params = {"lstm": []}
    d_in = input_size
    for _ in range(num_layers):
        key, k1, k2, k3, k4 = jax.random.split(key, 5)
        w_ih = jax.random.uniform(k1, (4 * hidden_size, d_in), jnp.float32, -k, k)
        w_hh = jax.random.uniform(k2, (4 * hidden_size, hidden_size), jnp.float32, -k, k)
        b_ih = jax.random.uniform(k3, (4 * hidden_size,), jnp.float32, -k, k)
        b_hh = jax.random.uniform(k4, (4 * hidden_size,), jnp.float32, -k, k)
        # Keep W_ih^T and W_hh^T separate (input projection is hoisted); fold biases.
        params["lstm"].append(
            (w_ih.T, w_hh.T, (b_ih + b_hh).reshape(1, 4 * hidden_size)))
        d_in = hidden_size
    key, k5, k6 = jax.random.split(key, 3)
    fc_w = jax.random.uniform(k5, (output_size, hidden_size), jnp.float32, -k, k)
    fc_b = jax.random.uniform(k6, (output_size,), jnp.float32, -k, k)
    params["fc_w"] = fc_w.T          # (H, O)
    params["fc_b"] = fc_b            # (O,)
    return params


def lstm_forward_ref(x, params):
    """Pure-JAX reference (lax.scan) for correctness check."""
    h_seq = jnp.transpose(x, (1, 0, 2))
    B = x.shape[0]
    for (w_ih_t, w_hh_t, b) in params["lstm"]:
        H = w_hh_t.shape[0]

        def step(carry, x_t, w_ih_t=w_ih_t, w_hh_t=w_hh_t, b=b, H=H):
            h, c = carry
            gates = x_t @ w_ih_t + h @ w_hh_t + b[0]
            i = jax.nn.sigmoid(gates[:, 0 * H:1 * H])
            f = jax.nn.sigmoid(gates[:, 1 * H:2 * H])
            g = jnp.tanh(gates[:, 2 * H:3 * H])
            o = jax.nn.sigmoid(gates[:, 3 * H:4 * H])
            c = f * c + i * g
            h = o * jnp.tanh(c)
            return (h, c), h

        init = (jnp.zeros((B, H), jnp.float32), jnp.zeros((B, H), jnp.float32))
        _, h_seq = jax.lax.scan(step, init, h_seq)
    return h_seq[-1] @ params["fc_w"] + params["fc_b"]


# ---------------------------------- main ------------------------------------

if __name__ == "__main__":
    B, T = 4, 8                    # batch, sequence length
    input_size = 8
    hidden1_size = 32
    num_layers = 2
    output_size = 4

    key = jax.random.PRNGKey(0)
    key, xk, pk = jax.random.split(key, 3)
    x = jax.random.normal(xk, (B, T, input_size), jnp.float32)
    params = init_params(pk, input_size, hidden1_size, num_layers, output_size)

    out = lstm_forward(x, params)
    out = jax.block_until_ready(out)

    ref = jax.block_until_ready(lstm_forward_ref(x, params))
    assert out.shape == (B, output_size), out.shape
    np.testing.assert_allclose(np.asarray(out), np.asarray(ref), rtol=1e-4, atol=5e-5)

    print("KERNEL_OK")
</pallas_src>

<mosaic_0001>
module attributes {stable_mosaic.version = 11 : i64} {
  func.func @_fused_lstm_kernel(%arg0: memref<64x8xf32, #tpu.memory_space<vmem>>, %arg1: memref<8x128xf32, #tpu.memory_space<vmem>>, %arg2: memref<32x128xf32, #tpu.memory_space<vmem>>, %arg3: memref<1x128xf32, #tpu.memory_space<vmem>>, %arg4: memref<32x128xf32, #tpu.memory_space<vmem>>, %arg5: memref<32x128xf32, #tpu.memory_space<vmem>>, %arg6: memref<1x128xf32, #tpu.memory_space<vmem>>, %arg7: memref<32x4xf32, #tpu.memory_space<vmem>>, %arg8: memref<1x4xf32, #tpu.memory_space<vmem>>, %arg9: memref<8x4xf32, #tpu.memory_space<vmem>>, %arg10: memref<64x128xf32, #tpu.memory_space<vmem>>, %arg11: memref<64x32xf32, #tpu.memory_space<vmem>>) attributes {dimension_semantics = [], scalar_prefetch = 0 : i64, scratch_operands = 2 : i64, tpu.core_type = #tpu.core_type<tc>} {
    %c0 = arith.constant 0 : index
    %c0_0 = arith.constant 0 : index
    %0 = vector.load %arg1[%c0, %c0_0] : memref<8x128xf32, #tpu.memory_space<vmem>>, vector<8x128xf32>
    %c0_1 = arith.constant 0 : index
    %c0_2 = arith.constant 0 : index
    %1 = vector.load %arg2[%c0_1, %c0_2] : memref<32x128xf32, #tpu.memory_space<vmem>>, vector<32x128xf32>
    %c0_3 = arith.constant 0 : index
    %c0_4 = arith.constant 0 : index
    %2 = vector.load %arg3[%c0_3, %c0_4] : memref<1x128xf32, #tpu.memory_space<vmem>>, vector<1x128xf32>
    %c0_5 = arith.constant 0 : index
    %c0_6 = arith.constant 0 : index
    %3 = vector.load %arg0[%c0_5, %c0_6] : memref<64x8xf32, #tpu.memory_space<vmem>>, vector<64x8xf32>
    %cst = arith.constant dense<0.000000e+00> : vector<64x128xf32>
    %4 = tpu.matmul %3, %0, %cst {dimension_numbers = #tpu.dot_dimension_numbers<[1], [0], [0], [1], [0, 0, 1, 1], [], []>} : vector<64x8xf32>, vector<8x128xf32>, vector<64x128xf32> -> vector<64x128xf32>
    %5 = vector.broadcast %2 : vector<1x128xf32> to vector<64x128xf32>
    %6 = arith.addf %4, %5 : vector<64x128xf32>
    %c0_7 = arith.constant 0 : index
    %c0_8 = arith.constant 0 : index
    %7 = vector.load %arg10[%c0_7, %c0_8] : memref<64x128xf32, #tpu.memory_space<vmem>>, vector<64x128xf32>
    tpu.vector_store %arg10[%c0_7, %c0_8], %6 {strides = array<i32>} : memref<64x128xf32, #tpu.memory_space<vmem>>, vector<64x128xf32>,
    %cst_9 = arith.constant 0.000000e+00 : f32
    %8 = vector.broadcast %cst_9 : f32 to vector<8x32xf32>
    %cst_10 = arith.constant 0.000000e+00 : f32
    %9 = vector.broadcast %cst_10 : f32 to vector<8x32xf32>
    %c0_i32 = arith.constant 0 : i32
    %c8_i32 = arith.constant 8 : i32
    %10 = arith.muli %c0_i32, %c8_i32 : i32
    %11 = tpu.assume_multiple %10, 8 : i32
    %12 = arith.index_cast %11 : i32 to index
    %c0_11 = arith.constant 0 : index
    %13 = vector.load %arg10[%12, %c0_11] : memref<64x128xf32, #tpu.memory_space<vmem>>, vector<8x128xf32>
    %cst_12 = arith.constant dense<0.000000e+00> : vector<8x128xf32>
    %14 = tpu.matmul %8, %1, %cst_12 {dimension_numbers = #tpu.dot_dimension_numbers<[1], [0], [0], [1], [0, 0, 1, 1], [], []>} : vector<8x32xf32>, vector<32x128xf32>, vector<8x128xf32> -> vector<8x128xf32>
    %15 = arith.addf %13, %14 : vector<8x128xf32>
    %16 = vector.extract_strided_slice %15 {offsets = [0, 0], sizes = [8, 32], strides = [1, 1]} : vector<8x128xf32> to vector<8x32xf32>
    %17 = arith.negf %16 : vector<8x32xf32>
    %18 = math.exp %17 : vector<8x32xf32>
    %cst_13 = arith.constant 1.000000e+00 : f32
    %19 = vector.broadcast %cst_13 : f32 to vector<8x32xf32>
    %20 = arith.addf %19, %18 : vector<8x32xf32>
    %21 = arith.divf %19, %20 : vector<8x32xf32>
    %22 = vector.extract_strided_slice %15 {offsets = [0, 32], sizes = [8, 32], strides = [1, 1]} : vector<8x128xf32> to vector<8x32xf32>
    %23 = arith.negf %22 : vector<8x32xf32>
    %24 = math.exp %23 : vector<8x32xf32>
    %cst_14 = arith.constant 1.000000e+00 : f32
    %25 = vector.broadcast %cst_14 : f32 to vector<8x32xf32>
    %26 = arith.addf %25, %24 : vector<8x32xf32>
    %27 = arith.divf %25, %26 : vector<8x32xf32>
    %28 = vector.extract_strided_slice %15 {offsets = [0, 64], sizes = [8, 32], strides = [1, 1]} : vector<8x128xf32> to vector<8x32xf32>
    %29 = math.tanh %28 : vector<8x32xf32>
    %30 = vector.extract_strided_slice %15 {offsets = [0, 96], sizes = [8, 32], strides = [1, 1]} : vector<8x128xf32> to vector<8x32xf32>
    %31 = arith.negf %30 : vector<8x32xf32>
    %32 = math.exp %31 : vector<8x32xf32>
    %cst_15 = arith.constant 1.000000e+00 : f32
    %33 = vector.broadcast %cst_15 : f32 to vector<8x32xf32>
    %34 = arith.addf %33, %32 : vector<8x32xf32>
    %35 = arith.divf %33, %34 : vector<8x32xf32>
    %36 = arith.mulf %27, %9 : vector<8x32xf32>
    %37 = arith.mulf %21, %29 : vector<8x32xf32>
    %38 = arith.addf %36, %37 : vector<8x32xf32>
    %39 = math.tanh %38 : vector<8x32xf32>
    %40 = arith.mulf %35, %39 : vector<8x32xf32>
    %41 = arith.index_cast %11 : i32 to index
    %c0_16 = arith.constant 0 : index
    %42 = vector.load %arg11[%41, %c0_16] : memref<64x32xf32, #tpu.memory_space<vmem>>, vector<8x32xf32>
    tpu.vector_store %arg11[%41, %c0_16], %40 {strides = array<i32>} : memref<64x32xf32, #tpu.memory_space<vmem>>, vector<8x32xf32>,
    %c1_i32 = arith.constant 1 : i32
    %c8_i32_17 = arith.constant 8 : i32
    %43 = arith.muli %c1_i32, %c8_i32_17 : i32
    %44 = tpu.assume_multiple %43, 8 : i32
    %45 = arith.index_cast %44 : i32 to index
    %c0_18 = arith.constant 0 : index
    %46 = vector.load %arg10[%45, %c0_18] : memref<64x128xf32, #tpu.memory_space<vmem>>, vector<8x128xf32>
    %cst_19 = arith.constant dense<0.000000e+00> : vector<8x128xf32>
    %47 = tpu.matmul %40, %1, %cst_19 {dimension_numbers = #tpu.dot_dimension_numbers<[1], [0], [0], [1], [0, 0, 1, 1], [], []>} : vector<8x32xf32>, vector<32x128xf32>, vector<8x128xf32> -> vector<8x128xf32>
    %48 = arith.addf %46, %47 : vector<8x128xf32>
    %49 = vector.extract_strided_slice %48 {offsets = [0, 0], sizes = [8, 32], strides = [1, 1]} : vector<8x128xf32> to vector<8x32xf32>
    %50 = arith.negf %49 : vector<8x32xf32>
    %51 = math.exp %50 : vector<8x32xf32>
    %cst_20 = arith.constant 1.000000e+00 : f32
    %52 = vector.broadcast %cst_20 : f32 to vector<8x32xf32>
    %53 = arith.addf %52, %51 : vector<8x32xf32>
    %54 = arith.divf %52, %53 : vector<8x32xf32>
    %55 = vector.extract_strided_slice %48 {offsets = [0, 32], sizes = [8, 32], strides = [1, 1]} : vector<8x128xf32> to vector<8x32xf32>
    %56 = arith.negf %55 : vector<8x32xf32>
    %57 = math.exp %56 : vector<8x32xf32>
    %cst_21 = arith.constant 1.000000e+00 : f32
    %58 = vector.broadcast %cst_21 : f32 to vector<8x32xf32>
    %59 = arith.addf %58, %57 : vector<8x32xf32>
    %60 = arith.divf %58, %59 : vector<8x32xf32>
    %61 = vector.extract_strided_slice %48 {offsets = [0, 64], sizes = [8, 32], strides = [1, 1]} : vector<8x128xf32> to vector<8x32xf32>
    %62 = math.tanh %61 : vector<8x32xf32>
    %63 = vector.extract_strided_slice %48 {offsets = [0, 96], sizes = [8, 32], strides = [1, 1]} : vector<8x128xf32> to vector<8x32xf32>
    %64 = arith.negf %63 : vector<8x32xf32>
    %65 = math.exp %64 : vector<8x32xf32>
    %cst_22 = arith.constant 1.000000e+00 : f32
    %66 = vector.broadcast %cst_22 : f32 to vector<8x32xf32>
    %67 = arith.addf %66, %65 : vector<8x32xf32>
    %68 = arith.divf %66, %67 : vector<8x32xf32>
    %69 = arith.mulf %60, %38 : vector<8x32xf32>
    %70 = arith.mulf %54, %62 : vector<8x32xf32>
    %71 = arith.addf %69, %70 : vector<8x32xf32>
    %72 = math.tanh %71 : vector<8x32xf32>
    %73 = arith.mulf %68, %72 : vector<8x32xf32>
    %74 = arith.index_cast %44 : i32 to index
    %c0_23 = arith.constant 0 : index
    %75 = vector.load %arg11[%74, %c0_23] : memref<64x32xf32, #tpu.memory_space<vmem>>, vector<8x32xf32>
    tpu.vector_store %arg11[%74, %c0_23], %73 {strides = array<i32>} : memref<64x32xf32, #tpu.memory_space<vmem>>, vector<8x32xf32>,
    %c2_i32 = arith.constant 2 : i32
    %c8_i32_24 = arith.constant 8 : i32
    %76 = arith.muli %c2_i32, %c8_i32_24 : i32
    %77 = tpu.assume_multiple %76, 8 : i32
    %78 = arith.index_cast %77 : i32 to index
    %c0_25 = arith.constant 0 : index
    %79 = vector.load %arg10[%78, %c0_25] : memref<64x128xf32, #tpu.memory_space<vmem>>, vector<8x128xf32>
    %cst_26 = arith.constant dense<0.000000e+00> : vector<8x128xf32>
    %80 = tpu.matmul %73, %1, %cst_26 {dimension_numbers = #tpu.dot_dimension_numbers<[1], [0], [0], [1], [0, 0, 1, 1], [], []>} : vector<8x32xf32>, vector<32x128xf32>, vector<8x128xf32> -> vector<8x128xf32>
    %81 = arith.addf %79, %80 : vector<8x128xf32>
    %82 = vector.extract_strided_slice %81 {offsets = [0, 0], sizes = [8, 32], strides = [1, 1]} : vector<8x128xf32> to vector<8x32xf32>
    %83 = arith.negf %82 : vector<8x32xf32>
    %84 = math.exp %83 : vector<8x32xf32>
    %cst_27 = arith.constant 1.000000e+00 : f32
    %85 = vector.broadcast %cst_27 : f32 to vector<8x32xf32>
    %86 = arith.addf %85, %84 : vector<8x32xf32>
    %87 = arith.divf %85, %86 : vector<8x32xf32>
    %88 = vector.extract_strided_slice %81 {offsets = [0, 32], sizes = [8, 32], strides = [1, 1]} : vector<8x128xf32> to vector<8x32xf32>
    %89 = arith.negf %88 : vector<8x32xf32>
    %90 = math.exp %89 : vector<8x32xf32>
    %cst_28 = arith.constant 1.000000e+00 : f32
    %91 = vector.broadcast %cst_28 : f32 to vector<8x32xf32>
    %92 = arith.addf %91, %90 : vector<8x32xf32>
    %93 = arith.divf %91, %92 : vector<8x32xf32>
    %94 = vector.extract_strided_slice %81 {offsets = [0, 64], sizes = [8, 32], strides = [1, 1]} : vector<8x128xf32> to vector<8x32xf32>
    %95 = math.tanh %94 : vector<8x32xf32>
    %96 = vector.extract_strided_slice %81 {offsets = [0, 96], sizes = [8, 32], strides = [1, 1]} : vector<8x128xf32> to vector<8x32xf32>
    %97 = arith.negf %96 : vector<8x32xf32>
    %98 = math.exp %97 : vector<8x32xf32>
    %cst_29 = arith.constant 1.000000e+00 : f32
    %99 = vector.broadcast %cst_29 : f32 to vector<8x32xf32>
    %100 = arith.addf %99, %98 : vector<8x32xf32>
    %101 = arith.divf %99, %100 : vector<8x32xf32>
    %102 = arith.mulf %93, %71 : vector<8x32xf32>
    %103 = arith.mulf %87, %95 : vector<8x32xf32>
    %104 = arith.addf %102, %103 : vector<8x32xf32>
    %105 = math.tanh %104 : vector<8x32xf32>
    %106 = arith.mulf %101, %105 : vector<8x32xf32>
    %107 = arith.index_cast %77 : i32 to index
    %c0_30 = arith.constant 0 : index
    %108 = vector.load %arg11[%107, %c0_30] : memref<64x32xf32, #tpu.memory_space<vmem>>, vector<8x32xf32>
    tpu.vector_store %arg11[%107, %c0_30], %106 {strides = array<i32>} : memref<64x32xf32, #tpu.memory_space<vmem>>, vector<8x32xf32>,
    %c3_i32 = arith.constant 3 : i32
    %c8_i32_31 = arith.constant 8 : i32
    %109 = arith.muli %c3_i32, %c8_i32_31 : i32
    %110 = tpu.assume_multiple %109, 8 : i32
    %111 = arith.index_cast %110 : i32 to index
    %c0_32 = arith.constant 0 : index
    %112 = vector.load %arg10[%111, %c0_32] : memref<64x128xf32, #tpu.memory_space<vmem>>, vector<8x128xf32>
    %cst_33 = arith.constant dense<0.000000e+00> : vector<8x128xf32>
    %113 = tpu.matmul %106, %1, %cst_33 {dimension_numbers = #tpu.dot_dimension_numbers<[1], [0], [0], [1], [0, 0, 1, 1], [], []>} : vector<8x32xf32>, vector<32x128xf32>, vector<8x128xf32> -> vector<8x128xf32>
    %114 = arith.addf %112, %113 : vector<8x128xf32>
    %115 = vector.extract_strided_slice %114 {offsets = [0, 0], sizes = [8, 32], strides = [1, 1]} : vector<8x128xf32> to vector<8x32xf32>
    %116 = arith.negf %115 : vector<8x32xf32>
    %117 = math.exp %116 : vector<8x32xf32>
    %cst_34 = arith.constant 1.000000e+00 : f32
    %118 = vector.broadcast %cst_34 : f32 to vector<8x32xf32>
    %119 = arith.addf %118, %117 : vector<8x32xf32>
    %120 = arith.divf %118, %119 : vector<8x32xf32>
    %121 = vector.extract_strided_slice %114 {offsets = [0, 32], sizes = [8, 32], strides = [1, 1]} : vector<8x128xf32> to vector<8x32xf32>
    %122 = arith.negf %121 : vector<8x32xf32>
    %123 = math.exp %122 : vector<8x32xf32>
    %cst_35 = arith.constant 1.000000e+00 : f32
    %124 = vector.broadcast %cst_35 : f32 to vector<8x32xf32>
    %125 = arith.addf %124, %123 : vector<8x32xf32>
    %126 = arith.divf %124, %125 : vector<8x32xf32>
    %127 = vector.extract_strided_slice %114 {offsets = [0, 64], sizes = [8, 32], strides = [1, 1]} : vector<8x128xf32> to vector<8x32xf32>
    %128 = math.tanh %127 : vector<8x32xf32>
    %129 = vector.extract_strided_slice %114 {offsets = [0, 96], sizes = [8, 32], strides = [1, 1]} : vector<8x128xf32> to vector<8x32xf32>
    %130 = arith.negf %129 : vector<8x32xf32>
    %131 = math.exp %130 : vector<8x32xf32>
    %cst_36 = arith.constant 1.000000e+00 : f32
    %132 = vector.broadcast %cst_36 : f32 to vector<8x32xf32>
    %133 = arith.addf %132, %131 : vector<8x32xf32>
    %134 = arith.divf %132, %133 : vector<8x32xf32>
    %135 = arith.mulf %126, %104 : vector<8x32xf32>
    %136 = arith.mulf %120, %128 : vector<8x32xf32>
    %137 = arith.addf %135, %136 : vector<8x32xf32>
    %138 = math.tanh %137 : vector<8x32xf32>
    %139 = arith.mulf %134, %138 : vector<8x32xf32>
    %140 = arith.index_cast %110 : i32 to index
    %c0_37 = arith.constant 0 : index
    %141 = vector.load %arg11[%140, %c0_37] : memref<64x32xf32, #tpu.memory_space<vmem>>, vector<8x32xf32>
    tpu.vector_store %arg11[%140, %c0_37], %139 {strides = array<i32>} : memref<64x32xf32, #tpu.memory_space<vmem>>, vector<8x32xf32>,
    %c4_i32 = arith.constant 4 : i32
    %c8_i32_38 = arith.constant 8 : i32
    %142 = arith.muli %c4_i32, %c8_i32_38 : i32
    %143 = tpu.assume_multiple %142, 8 : i32
    %144 = arith.index_cast %143 : i32 to index
    %c0_39 = arith.constant 0 : index
    %145 = vector.load %arg10[%144, %c0_39] : memref<64x128xf32, #tpu.memory_space<vmem>>, vector<8x128xf32>
    %cst_40 = arith.constant dense<0.000000e+00> : vector<8x128xf32>
    %146 = tpu.matmul %139, %1, %cst_40 {dimension_numbers = #tpu.dot_dimension_numbers<[1], [0], [0], [1], [0, 0, 1, 1], [], []>} : vector<8x32xf32>, vector<32x128xf32>, vector<8x128xf32> -> vector<8x128xf32>
    %147 = arith.addf %145, %146 : vector<8x128xf32>
    %148 = vector.extract_strided_slice %147 {offsets = [0, 0], sizes = [8, 32], strides = [1, 1]} : vector<8x128xf32> to vector<8x32xf32>
    %149 = arith.negf %148 : vector<8x32xf32>
    %150 = math.exp %149 : vector<8x32xf32>
    %cst_41 = arith.constant 1.000000e+00 : f32
    %151 = vector.broadcast %cst_41 : f32 to vector<8x32xf32>
    %152 = arith.addf %151, %150 : vector<8x32xf32>
    %153 = arith.divf %151, %152 : vector<8x32xf32>
    %154 = vector.extract_strided_slice %147 {offsets = [0, 32], sizes = [8, 32], strides = [1, 1]} : vector<8x128xf32> to vector<8x32xf32>
    %155 = arith.negf %154 : vector<8x32xf32>
    %156 = math.exp %155 : vector<8x32xf32>
    %cst_42 = arith.constant 1.000000e+00 : f32
    %157 = vector.broadcast %cst_42 : f32 to vector<8x32xf32>
    %158 = arith.addf %157, %156 : vector<8x32xf32>
    %159 = arith.divf %157, %158 : vector<8x32xf32>
    %160 = vector.extract_strided_slice %147 {offsets = [0, 64], sizes = [8, 32], strides = [1, 1]} : vector<8x128xf32> to vector<8x32xf32>
    %161 = math.tanh %160 : vector<8x32xf32>
    %162 = vector.extract_strided_slice %147 {offsets = [0, 96], sizes = [8, 32], strides = [1, 1]} : vector<8x128xf32> to vector<8x32xf32>
    %163 = arith.negf %162 : vector<8x32xf32>
    %164 = math.exp %163 : vector<8x32xf32>
    %cst_43 = arith.constant 1.000000e+00 : f32
    %165 = vector.broadcast %cst_43 : f32 to vector<8x32xf32>
    %166 = arith.addf %165, %164 : vector<8x32xf32>
    %167 = arith.divf %165, %166 : vector<8x32xf32>
    %168 = arith.mulf %159, %137 : vector<8x32xf32>
    %169 = arith.mulf %153, %161 : vector<8x32xf32>
    %170 = arith.addf %168, %169 : vector<8x32xf32>
    %171 = math.tanh %170 : vector<8x32xf32>
    %172 = arith.mulf %167, %171 : vector<8x32xf32>
    %173 = arith.index_cast %143 : i32 to index
    %c0_44 = arith.constant 0 : index
    %174 = vector.load %arg11[%173, %c0_44] : memref<64x32xf32, #tpu.memory_space<vmem>>, vector<8x32xf32>
    tpu.vector_store %arg11[%173, %c0_44], %172 {strides = array<i32>} : memref<64x32xf32, #tpu.memory_space<vmem>>, vector<8x32xf32>,
    %c5_i32 = arith.constant 5 : i32
    %c8_i32_45 = arith.constant 8 : i32
    %175 = arith.muli %c5_i32, %c8_i32_45 : i32
    %176 = tpu.assume_multiple %175, 8 : i32
    %177 = arith.index_cast %176 : i32 to index
    %c0_46 = arith.constant 0 : index
    %178 = vector.load %arg10[%177, %c0_46] : memref<64x128xf32, #tpu.memory_space<vmem>>, vector<8x128xf32>
    %cst_47 = arith.constant dense<0.000000e+00> : vector<8x128xf32>
    %179 = tpu.matmul %172, %1, %cst_47 {dimension_numbers = #tpu.dot_dimension_numbers<[1], [0], [0], [1], [0, 0, 1, 1], [], []>} : vector<8x32xf32>, vector<32x128xf32>, vector<8x128xf32> -> vector<8x128xf32>
    %180 = arith.addf %178, %179 : vector<8x128xf32>
    %181 = vector.extract_strided_slice %180 {offsets = [0, 0], sizes = [8, 32], strides = [1, 1]} : vector<8x128xf32> to vector<8x32xf32>
    %182 = arith.negf %181 : vector<8x32xf32>
    %183 = math.exp %182 : vector<8x32xf32>
    %cst_48 = arith.constant 1.000000e+00 : f32
    %184 = vector.broadcast %cst_48 : f32 to vector<8x32xf32>
    %185 = arith.addf %184, %183 : vector<8x32xf32>
    %186 = arith.divf %184, %185 : vector<8x32xf32>
    %187 = vector.extract_strided_slice %180 {offsets = [0, 32], sizes = [8, 32], strides = [1, 1]} : vector<8x128xf32> to vector<8x32xf32>
    %188 = arith.negf %187 : vector<8x32xf32>
    %189 = math.exp %188 : vector<8x32xf32>
    %cst_49 = arith.constant 1.000000e+00 : f32
    %190 = vector.broadcast %cst_49 : f32 to vector<8x32xf32>
    %191 = arith.addf %190, %189 : vector<8x32xf32>
    %192 = arith.divf %190, %191 : vector<8x32xf32>
    %193 = vector.extract_strided_slice %180 {offsets = [0, 64], sizes = [8, 32], strides = [1, 1]} : vector<8x128xf32> to vector<8x32xf32>
    %194 = math.tanh %193 : vector<8x32xf32>
    %195 = vector.extract_strided_slice %180 {offsets = [0, 96], sizes = [8, 32], strides = [1, 1]} : vector<8x128xf32> to vector<8x32xf32>
    %196 = arith.negf %195 : vector<8x32xf32>
    %197 = math.exp %196 : vector<8x32xf32>
    %cst_50 = arith.constant 1.000000e+00 : f32
    %198 = vector.broadcast %cst_50 : f32 to vector<8x32xf32>
    %199 = arith.addf %198, %197 : vector<8x32xf32>
    %200 = arith.divf %198, %199 : vector<8x32xf32>
    %201 = arith.mulf %192, %170 : vector<8x32xf32>
    %202 = arith.mulf %186, %194 : vector<8x32xf32>
    %203 = arith.addf %201, %202 : vector<8x32xf32>
    %204 = math.tanh %203 : vector<8x32xf32>
    %205 = arith.mulf %200, %204 : vector<8x32xf32>
    %206 = arith.index_cast %176 : i32 to index
    %c0_51 = arith.constant 0 : index
    %207 = vector.load %arg11[%206, %c0_51] : memref<64x32xf32, #tpu.memory_space<vmem>>, vector<8x32xf32>
    tpu.vector_store %arg11[%206, %c0_51], %205 {strides = array<i32>} : memref<64x32xf32, #tpu.memory_space<vmem>>, vector<8x32xf32>,
    %c6_i32 = arith.constant 6 : i32
    %c8_i32_52 = arith.constant 8 : i32
    %208 = arith.muli %c6_i32, %c8_i32_52 : i32
    %209 = tpu.assume_multiple %208, 8 : i32
    %210 = arith.index_cast %209 : i32 to index
    %c0_53 = arith.constant 0 : index
    %211 = vector.load %arg10[%210, %c0_53] : memref<64x128xf32, #tpu.memory_space<vmem>>, vector<8x128xf32>
    %cst_54 = arith.constant dense<0.000000e+00> : vector<8x128xf32>
    %212 = tpu.matmul %205, %1, %cst_54 {dimension_numbers = #tpu.dot_dimension_numbers<[1], [0], [0], [1], [0, 0, 1, 1], [], []>} : vector<8x32xf32>, vector<32x128xf32>, vector<8x128xf32> -> vector<8x128xf32>
    %213 = arith.addf %211, %212 : vector<8x128xf32>
    %214 = vector.extract_strided_slice %213 {offsets = [0, 0], sizes = [8, 32], strides = [1, 1]} : vector<8x128xf32> to vector<8x32xf32>
    %215 = arith.negf %214 : vector<8x32xf32>
    %216 = math.exp %215 : vector<8x32xf32>
    %cst_55 = arith.constant 1.000000e+00 : f32
    %217 = vector.broadcast %cst_55 : f32 to vector<8x32xf32>
    %218 = arith.addf %217, %216 : vector<8x32xf32>
    %219 = arith.divf %217, %218 : vector<8x32xf32>
    %220 = vector.extract_strided_slice %213 {offsets = [0, 32], sizes = [8, 32], strides = [1, 1]} : vector<8x128xf32> to vector<8x32xf32>
    %221 = arith.negf %220 : vector<8x32xf32>
    %222 = math.exp %221 : vector<8x32xf32>
    %cst_56 = arith.constant 1.000000e+00 : f32
    %223 = vector.broadcast %cst_56 : f32 to vector<8x32xf32>
    %224 = arith.addf %223, %222 : vector<8x32xf32>
    %225 = arith.divf %223, %224 : vector<8x32xf32>
    %226 = vector.extract_strided_slice %213 {offsets = [0, 64], sizes = [8, 32], strides = [1, 1]} : vector<8x128xf32> to vector<8x32xf32>
    %227 = math.tanh %226 : vector<8x32xf32>
    %228 = vector.extract_strided_slice %213 {offsets = [0, 96], sizes = [8, 32], strides = [1, 1]} : vector<8x128xf32> to vector<8x32xf32>
    %229 = arith.negf %228 : vector<8x32xf32>
    %230 = math.exp %229 : vector<8x32xf32>
    %cst_57 = arith.constant 1.000000e+00 : f32
    %231 = vector.broadcast %cst_57 : f32 to vector<8x32xf32>
    %232 = arith.addf %231, %230 : vector<8x32xf32>
    %233 = arith.divf %231, %232 : vector<8x32xf32>
    %234 = arith.mulf %225, %203 : vector<8x32xf32>
    %235 = arith.mulf %219, %227 : vector<8x32xf32>
    %236 = arith.addf %234, %235 : vector<8x32xf32>
    %237 = math.tanh %236 : vector<8x32xf32>
    %238 = arith.mulf %233, %237 : vector<8x32xf32>
    %239 = arith.index_cast %209 : i32 to index
    %c0_58 = arith.constant 0 : index
    %240 = vector.load %arg11[%239, %c0_58] : memref<64x32xf32, #tpu.memory_space<vmem>>, vector<8x32xf32>
    tpu.vector_store %arg11[%239, %c0_58], %238 {strides = array<i32>} : memref<64x32xf32, #tpu.memory_space<vmem>>, vector<8x32xf32>,
    %c7_i32 = arith.constant 7 : i32
    %c8_i32_59 = arith.constant 8 : i32
    %241 = arith.muli %c7_i32, %c8_i32_59 : i32
    %242 = tpu.assume_multiple %241, 8 : i32
    %243 = arith.index_cast %242 : i32 to index
    %c0_60 = arith.constant 0 : index
    %244 = vector.load %arg10[%243, %c0_60] : memref<64x128xf32, #tpu.memory_space<vmem>>, vector<8x128xf32>
    %cst_61 = arith.constant dense<0.000000e+00> : vector<8x128xf32>
    %245 = tpu.matmul %238, %1, %cst_61 {dimension_numbers = #tpu.dot_dimension_numbers<[1], [0], [0], [1], [0, 0, 1, 1], [], []>} : vector<8x32xf32>, vector<32x128xf32>, vector<8x128xf32> -> vector<8x128xf32>
    %246 = arith.addf %244, %245 : vector<8x128xf32>
    %247 = vector.extract_strided_slice %246 {offsets = [0, 0], sizes = [8, 32], strides = [1, 1]} : vector<8x128xf32> to vector<8x32xf32>
    %248 = arith.negf %247 : vector<8x32xf32>
    %249 = math.exp %248 : vector<8x32xf32>
    %cst_62 = arith.constant 1.000000e+00 : f32
    %250 = vector.broadcast %cst_62 : f32 to vector<8x32xf32>
    %251 = arith.addf %250, %249 : vector<8x32xf32>
    %252 = arith.divf %250, %251 : vector<8x32xf32>
    %253 = vector.extract_strided_slice %246 {offsets = [0, 32], sizes = [8, 32], strides = [1, 1]} : vector<8x128xf32> to vector<8x32xf32>
    %254 = arith.negf %253 : vector<8x32xf32>
    %255 = math.exp %254 : vector<8x32xf32>
    %cst_63 = arith.constant 1.000000e+00 : f32
    %256 = vector.broadcast %cst_63 : f32 to vector<8x32xf32>
    %257 = arith.addf %256, %255 : vector<8x32xf32>
    %258 = arith.divf %256, %257 : vector<8x32xf32>
    %259 = vector.extract_strided_slice %246 {offsets = [0, 64], sizes = [8, 32], strides = [1, 1]} : vector<8x128xf32> to vector<8x32xf32>
    %260 = math.tanh %259 : vector<8x32xf32>
    %261 = vector.extract_strided_slice %246 {offsets = [0, 96], sizes = [8, 32], strides = [1, 1]} : vector<8x128xf32> to vector<8x32xf32>
    %262 = arith.negf %261 : vector<8x32xf32>
    %263 = math.exp %262 : vector<8x32xf32>
    %cst_64 = arith.constant 1.000000e+00 : f32
    %264 = vector.broadcast %cst_64 : f32 to vector<8x32xf32>
    %265 = arith.addf %264, %263 : vector<8x32xf32>
    %266 = arith.divf %264, %265 : vector<8x32xf32>
    %267 = arith.mulf %258, %236 : vector<8x32xf32>
    %268 = arith.mulf %252, %260 : vector<8x32xf32>
    %269 = arith.addf %267, %268 : vector<8x32xf32>
    %270 = math.tanh %269 : vector<8x32xf32>
    %271 = arith.mulf %266, %270 : vector<8x32xf32>
    %272 = arith.index_cast %242 : i32 to index
    %c0_65 = arith.constant 0 : index
    %273 = vector.load %arg11[%272, %c0_65] : memref<64x32xf32, #tpu.memory_space<vmem>>, vector<8x32xf32>
    tpu.vector_store %arg11[%272, %c0_65], %271 {strides = array<i32>} : memref<64x32xf32, #tpu.memory_space<vmem>>, vector<8x32xf32>,
    %c8_i32_66 = arith.constant 8 : i32
    %c0_67 = arith.constant 0 : index
    %c0_68 = arith.constant 0 : index
    %274 = vector.load %arg4[%c0_67, %c0_68] : memref<32x128xf32, #tpu.memory_space<vmem>>, vector<32x128xf32>
    %c0_69 = arith.constant 0 : index
    %c0_70 = arith.constant 0 : index
    %275 = vector.load %arg5[%c0_69, %c0_70] : memref<32x128xf32, #tpu.memory_space<vmem>>, vector<32x128xf32>
    %c0_71 = arith.constant 0 : index
    %c0_72 = arith.constant 0 : index
    %276 = vector.load %arg6[%c0_71, %c0_72] : memref<1x128xf32, #tpu.memory_space<vmem>>, vector<1x128xf32>
    %c0_73 = arith.constant 0 : index
    %c0_74 = arith.constant 0 : index
    %277 = vector.load %arg11[%c0_73, %c0_74] : memref<64x32xf32, #tpu.memory_space<vmem>>, vector<64x32xf32>
    %cst_75 = arith.constant dense<0.000000e+00> : vector<64x128xf32>
    %278 = tpu.matmul %277, %274, %cst_75 {dimension_numbers = #tpu.dot_dimension_numbers<[1], [0], [0], [1], [0, 0, 1, 1], [], []>} : vector<64x32xf32>, vector<32x128xf32>, vector<64x128xf32> -> vector<64x128xf32>
    %279 = vector.broadcast %276 : vector<1x128xf32> to vector<64x128xf32>
    %280 = arith.addf %278, %279 : vector<64x128xf32>
    %c0_76 = arith.constant 0 : index
    %c0_77 = arith.constant 0 : index
    %281 = vector.load %arg10[%c0_76, %c0_77] : memref<64x128xf32, #tpu.memory_space<vmem>>, vector<64x128xf32>
    tpu.vector_store %arg10[%c0_76, %c0_77], %280 {strides = array<i32>} : memref<64x128xf32, #tpu.memory_space<vmem>>, vector<64x128xf32>,
    %cst_78 = arith.constant 0.000000e+00 : f32
    %282 = vector.broadcast %cst_78 : f32 to vector<8x32xf32>
    %cst_79 = arith.constant 0.000000e+00 : f32
    %283 = vector.broadcast %cst_79 : f32 to vector<8x32xf32>
    %c0_i32_80 = arith.constant 0 : i32
    %c8_i32_81 = arith.constant 8 : i32
    %284 = arith.muli %c0_i32_80, %c8_i32_81 : i32
    %285 = tpu.assume_multiple %284, 8 : i32
    %286 = arith.index_cast %285 : i32 to index
    %c0_82 = arith.constant 0 : index
    %287 = vector.load %arg10[%286, %c0_82] : memref<64x128xf32, #tpu.memory_space<vmem>>, vector<8x128xf32>
    %cst_83 = arith.constant dense<0.000000e+00> : vector<8x128xf32>
    %288 = tpu.matmul %282, %275, %cst_83 {dimension_numbers = #tpu.dot_dimension_numbers<[1], [0], [0], [1], [0, 0, 1, 1], [], []>} : vector<8x32xf32>, vector<32x128xf32>, vector<8x128xf32> -> vector<8x128xf32>
    %289 = arith.addf %287, %288 : vector<8x128xf32>
    %290 = vector.extract_strided_slice %289 {offsets = [0, 0], sizes = [8, 32], strides = [1, 1]} : vector<8x128xf32> to vector<8x32xf32>
    %291 = arith.negf %290 : vector<8x32xf32>
    %292 = math.exp %291 : vector<8x32xf32>
    %cst_84 = arith.constant 1.000000e+00 : f32
    %293 = vector.broadcast %cst_84 : f32 to vector<8x32xf32>
    %294 = arith.addf %293, %292 : vector<8x32xf32>
    %295 = arith.divf %293, %294 : vector<8x32xf32>
    %296 = vector.extract_strided_slice %289 {offsets = [0, 32], sizes = [8, 32], strides = [1, 1]} : vector<8x128xf32> to vector<8x32xf32>
    %297 = arith.negf %296 : vector<8x32xf32>
    %298 = math.exp %297 : vector<8x32xf32>
    %cst_85 = arith.constant 1.000000e+00 : f32
    %299 = vector.broadcast %cst_85 : f32 to vector<8x32xf32>
    %300 = arith.addf %299, %298 : vector<8x32xf32>
    %301 = arith.divf %299, %300 : vector<8x32xf32>
    %302 = vector.extract_strided_slice %289 {offsets = [0, 64], sizes = [8, 32], strides = [1, 1]} : vector<8x128xf32> to vector<8x32xf32>
    %303 = math.tanh %302 : vector<8x32xf32>
    %304 = vector.extract_strided_slice %289 {offsets = [0, 96], sizes = [8, 32], strides = [1, 1]} : vector<8x128xf32> to vector<8x32xf32>
    %305 = arith.negf %304 : vector<8x32xf32>
    %306 = math.exp %305 : vector<8x32xf32>
    %cst_86 = arith.constant 1.000000e+00 : f32
    %307 = vector.broadcast %cst_86 : f32 to vector<8x32xf32>
    %308 = arith.addf %307, %306 : vector<8x32xf32>
    %309 = arith.divf %307, %308 : vector<8x32xf32>
    %310 = arith.mulf %301, %283 : vector<8x32xf32>
    %311 = arith.mulf %295, %303 : vector<8x32xf32>
    %312 = arith.addf %310, %311 : vector<8x32xf32>
    %313 = math.tanh %312 : vector<8x32xf32>
    %314 = arith.mulf %309, %313 : vector<8x32xf32>
    %c1_i32_87 = arith.constant 1 : i32
    %c8_i32_88 = arith.constant 8 : i32
    %315 = arith.muli %c1_i32_87, %c8_i32_88 : i32
    %316 = tpu.assume_multiple %315, 8 : i32
    %317 = arith.index_cast %316 : i32 to index
    %c0_89 = arith.constant 0 : index
    %318 = vector.load %arg10[%317, %c0_89] : memref<64x128xf32, #tpu.memory_space<vmem>>, vector<8x128xf32>
    %cst_90 = arith.constant dense<0.000000e+00> : vector<8x128xf32>
    %319 = tpu.matmul %314, %275, %cst_90 {dimension_numbers = #tpu.dot_dimension_numbers<[1], [0], [0], [1], [0, 0, 1, 1], [], []>} : vector<8x32xf32>, vector<32x128xf32>, vector<8x128xf32> -> vector<8x128xf32>
    %320 = arith.addf %318, %319 : vector<8x128xf32>
    %321 = vector.extract_strided_slice %320 {offsets = [0, 0], sizes = [8, 32], strides = [1, 1]} : vector<8x128xf32> to vector<8x32xf32>
    %322 = arith.negf %321 : vector<8x32xf32>
    %323 = math.exp %322 : vector<8x32xf32>
    %cst_91 = arith.constant 1.000000e+00 : f32
    %324 = vector.broadcast %cst_91 : f32 to vector<8x32xf32>
    %325 = arith.addf %324, %323 : vector<8x32xf32>
    %326 = arith.divf %324, %325 : vector<8x32xf32>
    %327 = vector.extract_strided_slice %320 {offsets = [0, 32], sizes = [8, 32], strides = [1, 1]} : vector<8x128xf32> to vector<8x32xf32>
    %328 = arith.negf %327 : vector<8x32xf32>
    %329 = math.exp %328 : vector<8x32xf32>
    %cst_92 = arith.constant 1.000000e+00 : f32
    %330 = vector.broadcast %cst_92 : f32 to vector<8x32xf32>
    %331 = arith.addf %330, %329 : vector<8x32xf32>
    %332 = arith.divf %330, %331 : vector<8x32xf32>
    %333 = vector.extract_strided_slice %320 {offsets = [0, 64], sizes = [8, 32], strides = [1, 1]} : vector<8x128xf32> to vector<8x32xf32>
    %334 = math.tanh %333 : vector<8x32xf32>
    %335 = vector.extract_strided_slice %320 {offsets = [0, 96], sizes = [8, 32], strides = [1, 1]} : vector<8x128xf32> to vector<8x32xf32>
    %336 = arith.negf %335 : vector<8x32xf32>
    %337 = math.exp %336 : vector<8x32xf32>
    %cst_93 = arith.constant 1.000000e+00 : f32
    %338 = vector.broadcast %cst_93 : f32 to vector<8x32xf32>
    %339 = arith.addf %338, %337 : vector<8x32xf32>
    %340 = arith.divf %338, %339 : vector<8x32xf32>
    %341 = arith.mulf %332, %312 : vector<8x32xf32>
    %342 = arith.mulf %326, %334 : vector<8x32xf32>
    %343 = arith.addf %341, %342 : vector<8x32xf32>
    %344 = math.tanh %343 : vector<8x32xf32>
    %345 = arith.mulf %340, %344 : vector<8x32xf32>
    %c2_i32_94 = arith.constant 2 : i32
    %c8_i32_95 = arith.constant 8 : i32
    %346 = arith.muli %c2_i32_94, %c8_i32_95 : i32
    %347 = tpu.assume_multiple %346, 8 : i32
    %348 = arith.index_cast %347 : i32 to index
    %c0_96 = arith.constant 0 : index
    %349 = vector.load %arg10[%348, %c0_96] : memref<64x128xf32, #tpu.memory_space<vmem>>, vector<8x128xf32>
    %cst_97 = arith.constant dense<0.000000e+00> : vector<8x128xf32>
    %350 = tpu.matmul %345, %275, %cst_97 {dimension_numbers = #tpu.dot_dimension_numbers<[1], [0], [0], [1], [0, 0, 1, 1], [], []>} : vector<8x32xf32>, vector<32x128xf32>, vector<8x128xf32> -> vector<8x128xf32>
    %351 = arith.addf %349, %350 : vector<8x128xf32>
    %352 = vector.extract_strided_slice %351 {offsets = [0, 0], sizes = [8, 32], strides = [1, 1]} : vector<8x128xf32> to vector<8x32xf32>
    %353 = arith.negf %352 : vector<8x32xf32>
    %354 = math.exp %353 : vector<8x32xf32>
    %cst_98 = arith.constant 1.000000e+00 : f32
    %355 = vector.broadcast %cst_98 : f32 to vector<8x32xf32>
    %356 = arith.addf %355, %354 : vector<8x32xf32>
    %357 = arith.divf %355, %356 : vector<8x32xf32>
    %358 = vector.extract_strided_slice %351 {offsets = [0, 32], sizes = [8, 32], strides = [1, 1]} : vector<8x128xf32> to vector<8x32xf32>
    %359 = arith.negf %358 : vector<8x32xf32>
    %360 = math.exp %359 : vector<8x32xf32>
    %cst_99 = arith.constant 1.000000e+00 : f32
    %361 = vector.broadcast %cst_99 : f32 to vector<8x32xf32>
    %362 = arith.addf %361, %360 : vector<8x32xf32>
    %363 = arith.divf %361, %362 : vector<8x32xf32>
    %364 = vector.extract_strided_slice %351 {offsets = [0, 64], sizes = [8, 32], strides = [1, 1]} : vector<8x128xf32> to vector<8x32xf32>
    %365 = math.tanh %364 : vector<8x32xf32>
    %366 = vector.extract_strided_slice %351 {offsets = [0, 96], sizes = [8, 32], strides = [1, 1]} : vector<8x128xf32> to vector<8x32xf32>
    %367 = arith.negf %366 : vector<8x32xf32>
    %368 = math.exp %367 : vector<8x32xf32>
    %cst_100 = arith.constant 1.000000e+00 : f32
    %369 = vector.broadcast %cst_100 : f32 to vector<8x32xf32>
    %370 = arith.addf %369, %368 : vector<8x32xf32>
    %371 = arith.divf %369, %370 : vector<8x32xf32>
    %372 = arith.mulf %363, %343 : vector<8x32xf32>
    %373 = arith.mulf %357, %365 : vector<8x32xf32>
    %374 = arith.addf %372, %373 : vector<8x32xf32>
    %375 = math.tanh %374 : vector<8x32xf32>
    %376 = arith.mulf %371, %375 : vector<8x32xf32>
    %c3_i32_101 = arith.constant 3 : i32
    %c8_i32_102 = arith.constant 8 : i32
    %377 = arith.muli %c3_i32_101, %c8_i32_102 : i32
    %378 = tpu.assume_multiple %377, 8 : i32
    %379 = arith.index_cast %378 : i32 to index
    %c0_103 = arith.constant 0 : index
    %380 = vector.load %arg10[%379, %c0_103] : memref<64x128xf32, #tpu.memory_space<vmem>>, vector<8x128xf32>
    %cst_104 = arith.constant dense<0.000000e+00> : vector<8x128xf32>
    %381 = tpu.matmul %376, %275, %cst_104 {dimension_numbers = #tpu.dot_dimension_numbers<[1], [0], [0], [1], [0, 0, 1, 1], [], []>} : vector<8x32xf32>, vector<32x128xf32>, vector<8x128xf32> -> vector<8x128xf32>
    %382 = arith.addf %380, %381 : vector<8x128xf32>
    %383 = vector.extract_strided_slice %382 {offsets = [0, 0], sizes = [8, 32], strides = [1, 1]} : vector<8x128xf32> to vector<8x32xf32>
    %384 = arith.negf %383 : vector<8x32xf32>
    %385 = math.exp %384 : vector<8x32xf32>
    %cst_105 = arith.constant 1.000000e+00 : f32
    %386 = vector.broadcast %cst_105 : f32 to vector<8x32xf32>
    %387 = arith.addf %386, %385 : vector<8x32xf32>
    %388 = arith.divf %386, %387 : vector<8x32xf32>
    %389 = vector.extract_strided_slice %382 {offsets = [0, 32], sizes = [8, 32], strides = [1, 1]} : vector<8x128xf32> to vector<8x32xf32>
    %390 = arith.negf %389 : vector<8x32xf32>
    %391 = math.exp %390 : vector<8x32xf32>
    %cst_106 = arith.constant 1.000000e+00 : f32
    %392 = vector.broadcast %cst_106 : f32 to vector<8x32xf32>
    %393 = arith.addf %392, %391 : vector<8x32xf32>
    %394 = arith.divf %392, %393 : vector<8x32xf32>
    %395 = vector.extract_strided_slice %382 {offsets = [0, 64], sizes = [8, 32], strides = [1, 1]} : vector<8x128xf32> to vector<8x32xf32>
    %396 = math.tanh %395 : vector<8x32xf32>
    %397 = vector.extract_strided_slice %382 {offsets = [0, 96], sizes = [8, 32], strides = [1, 1]} : vector<8x128xf32> to vector<8x32xf32>
    %398 = arith.negf %397 : vector<8x32xf32>
    %399 = math.exp %398 : vector<8x32xf32>
    %cst_107 = arith.constant 1.000000e+00 : f32
    %400 = vector.broadcast %cst_107 : f32 to vector<8x32xf32>
    %401 = arith.addf %400, %399 : vector<8x32xf32>
    %402 = arith.divf %400, %401 : vector<8x32xf32>
    %403 = arith.mulf %394, %374 : vector<8x32xf32>
    %404 = arith.mulf %388, %396 : vector<8x32xf32>
    %405 = arith.addf %403, %404 : vector<8x32xf32>
    %406 = math.tanh %405 : vector<8x32xf32>
    %407 = arith.mulf %402, %406 : vector<8x32xf32>
    %c4_i32_108 = arith.constant 4 : i32
    %c8_i32_109 = arith.constant 8 : i32
    %408 = arith.muli %c4_i32_108, %c8_i32_109 : i32
    %409 = tpu.assume_multiple %408, 8 : i32
    %410 = arith.index_cast %409 : i32 to index
    %c0_110 = arith.constant 0 : index
    %411 = vector.load %arg10[%410, %c0_110] : memref<64x128xf32, #tpu.memory_space<vmem>>, vector<8x128xf32>
    %cst_111 = arith.constant dense<0.000000e+00> : vector<8x128xf32>
    %412 = tpu.matmul %407, %275, %cst_111 {dimension_numbers = #tpu.dot_dimension_numbers<[1], [0], [0], [1], [0, 0, 1, 1], [], []>} : vector<8x32xf32>, vector<32x128xf32>, vector<8x128xf32> -> vector<8x128xf32>
    %413 = arith.addf %411, %412 : vector<8x128xf32>
    %414 = vector.extract_strided_slice %413 {offsets = [0, 0], sizes = [8, 32], strides = [1, 1]} : vector<8x128xf32> to vector<8x32xf32>
    %415 = arith.negf %414 : vector<8x32xf32>
    %416 = math.exp %415 : vector<8x32xf32>
    %cst_112 = arith.constant 1.000000e+00 : f32
    %417 = vector.broadcast %cst_112 : f32 to vector<8x32xf32>
    %418 = arith.addf %417, %416 : vector<8x32xf32>
    %419 = arith.divf %417, %418 : vector<8x32xf32>
    %420 = vector.extract_strided_slice %413 {offsets = [0, 32], sizes = [8, 32], strides = [1, 1]} : vector<8x128xf32> to vector<8x32xf32>
    %421 = arith.negf %420 : vector<8x32xf32>
    %422 = math.exp %421 : vector<8x32xf32>
    %cst_113 = arith.constant 1.000000e+00 : f32
    %423 = vector.broadcast %cst_113 : f32 to vector<8x32xf32>
    %424 = arith.addf %423, %422 : vector<8x32xf32>
    %425 = arith.divf %423, %424 : vector<8x32xf32>
    %426 = vector.extract_strided_slice %413 {offsets = [0, 64], sizes = [8, 32], strides = [1, 1]} : vector<8x128xf32> to vector<8x32xf32>
    %427 = math.tanh %426 : vector<8x32xf32>
    %428 = vector.extract_strided_slice %413 {offsets = [0, 96], sizes = [8, 32], strides = [1, 1]} : vector<8x128xf32> to vector<8x32xf32>
    %429 = arith.negf %428 : vector<8x32xf32>
    %430 = math.exp %429 : vector<8x32xf32>
    %cst_114 = arith.constant 1.000000e+00 : f32
    %431 = vector.broadcast %cst_114 : f32 to vector<8x32xf32>
    %432 = arith.addf %431, %430 : vector<8x32xf32>
    %433 = arith.divf %431, %432 : vector<8x32xf32>
    %434 = arith.mulf %425, %405 : vector<8x32xf32>
    %435 = arith.mulf %419, %427 : vector<8x32xf32>
    %436 = arith.addf %434, %435 : vector<8x32xf32>
    %437 = math.tanh %436 : vector<8x32xf32>
    %438 = arith.mulf %433, %437 : vector<8x32xf32>
    %c5_i32_115 = arith.constant 5 : i32
    %c8_i32_116 = arith.constant 8 : i32
    %439 = arith.muli %c5_i32_115, %c8_i32_116 : i32
    %440 = tpu.assume_multiple %439, 8 : i32
    %441 = arith.index_cast %440 : i32 to index
    %c0_117 = arith.constant 0 : index
    %442 = vector.load %arg10[%441, %c0_117] : memref<64x128xf32, #tpu.memory_space<vmem>>, vector<8x128xf32>
    %cst_118 = arith.constant dense<0.000000e+00> : vector<8x128xf32>
    %443 = tpu.matmul %438, %275, %cst_118 {dimension_numbers = #tpu.dot_dimension_numbers<[1], [0], [0], [1], [0, 0, 1, 1], [], []>} : vector<8x32xf32>, vector<32x128xf32>, vector<8x128xf32> -> vector<8x128xf32>
    %444 = arith.addf %442, %443 : vector<8x128xf32>
    %445 = vector.extract_strided_slice %444 {offsets = [0, 0], sizes = [8, 32], strides = [1, 1]} : vector<8x128xf32> to vector<8x32xf32>
    %446 = arith.negf %445 : vector<8x32xf32>
    %447 = math.exp %446 : vector<8x32xf32>
    %cst_119 = arith.constant 1.000000e+00 : f32
    %448 = vector.broadcast %cst_119 : f32 to vector<8x32xf32>
    %449 = arith.addf %448, %447 : vector<8x32xf32>
    %450 = arith.divf %448, %449 : vector<8x32xf32>
    %451 = vector.extract_strided_slice %444 {offsets = [0, 32], sizes = [8, 32], strides = [1, 1]} : vector<8x128xf32> to vector<8x32xf32>
    %452 = arith.negf %451 : vector<8x32xf32>
    %453 = math.exp %452 : vector<8x32xf32>
    %cst_120 = arith.constant 1.000000e+00 : f32
    %454 = vector.broadcast %cst_120 : f32 to vector<8x32xf32>
    %455 = arith.addf %454, %453 : vector<8x32xf32>
    %456 = arith.divf %454, %455 : vector<8x32xf32>
    %457 = vector.extract_strided_slice %444 {offsets = [0, 64], sizes = [8, 32], strides = [1, 1]} : vector<8x128xf32> to vector<8x32xf32>
    %458 = math.tanh %457 : vector<8x32xf32>
    %459 = vector.extract_strided_slice %444 {offsets = [0, 96], sizes = [8, 32], strides = [1, 1]} : vector<8x128xf32> to vector<8x32xf32>
    %460 = arith.negf %459 : vector<8x32xf32>
    %461 = math.exp %460 : vector<8x32xf32>
    %cst_121 = arith.constant 1.000000e+00 : f32
    %462 = vector.broadcast %cst_121 : f32 to vector<8x32xf32>
    %463 = arith.addf %462, %461 : vector<8x32xf32>
    %464 = arith.divf %462, %463 : vector<8x32xf32>
    %465 = arith.mulf %456, %436 : vector<8x32xf32>
    %466 = arith.mulf %450, %458 : vector<8x32xf32>
    %467 = arith.addf %465, %466 : vector<8x32xf32>
    %468 = math.tanh %467 : vector<8x32xf32>
    %469 = arith.mulf %464, %468 : vector<8x32xf32>
    %c6_i32_122 = arith.constant 6 : i32
    %c8_i32_123 = arith.constant 8 : i32
    %470 = arith.muli %c6_i32_122, %c8_i32_123 : i32
    %471 = tpu.assume_multiple %470, 8 : i32
    %472 = arith.index_cast %471 : i32 to index
    %c0_124 = arith.constant 0 : index
    %473 = vector.load %arg10[%472, %c0_124] : memref<64x128xf32, #tpu.memory_space<vmem>>, vector<8x128xf32>
    %cst_125 = arith.constant dense<0.000000e+00> : vector<8x128xf32>
    %474 = tpu.matmul %469, %275, %cst_125 {dimension_numbers = #tpu.dot_dimension_numbers<[1], [0], [0], [1], [0, 0, 1, 1], [], []>} : vector<8x32xf32>, vector<32x128xf32>, vector<8x128xf32> -> vector<8x128xf32>
    %475 = arith.addf %473, %474 : vector<8x128xf32>
    %476 = vector.extract_strided_slice %475 {offsets = [0, 0], sizes = [8, 32], strides = [1, 1]} : vector<8x128xf32> to vector<8x32xf32>
    %477 = arith.negf %476 : vector<8x32xf32>
    %478 = math.exp %477 : vector<8x32xf32>
    %cst_126 = arith.constant 1.000000e+00 : f32
    %479 = vector.broadcast %cst_126 : f32 to vector<8x32xf32>
    %480 = arith.addf %479, %478 : vector<8x32xf32>
    %481 = arith.divf %479, %480 : vector<8x32xf32>
    %482 = vector.extract_strided_slice %475 {offsets = [0, 32], sizes = [8, 32], strides = [1, 1]} : vector<8x128xf32> to vector<8x32xf32>
    %483 = arith.negf %482 : vector<8x32xf32>
    %484 = math.exp %483 : vector<8x32xf32>
    %cst_127 = arith.constant 1.000000e+00 : f32
    %485 = vector.broadcast %cst_127 : f32 to vector<8x32xf32>
    %486 = arith.addf %485, %484 : vector<8x32xf32>
    %487 = arith.divf %485, %486 : vector<8x32xf32>
    %488 = vector.extract_strided_slice %475 {offsets = [0, 64], sizes = [8, 32], strides = [1, 1]} : vector<8x128xf32> to vector<8x32xf32>
    %489 = math.tanh %488 : vector<8x32xf32>
    %490 = vector.extract_strided_slice %475 {offsets = [0, 96], sizes = [8, 32], strides = [1, 1]} : vector<8x128xf32> to vector<8x32xf32>
    %491 = arith.negf %490 : vector<8x32xf32>
    %492 = math.exp %491 : vector<8x32xf32>
    %cst_128 = arith.constant 1.000000e+00 : f32
    %493 = vector.broadcast %cst_128 : f32 to vector<8x32xf32>
    %494 = arith.addf %493, %492 : vector<8x32xf32>
    %495 = arith.divf %493, %494 : vector<8x32xf32>
    %496 = arith.mulf %487, %467 : vector<8x32xf32>
    %497 = arith.mulf %481, %489 : vector<8x32xf32>
    %498 = arith.addf %496, %497 : vector<8x32xf32>
    %499 = math.tanh %498 : vector<8x32xf32>
    %500 = arith.mulf %495, %499 : vector<8x32xf32>
    %c7_i32_129 = arith.constant 7 : i32
    %c8_i32_130 = arith.constant 8 : i32
    %501 = arith.muli %c7_i32_129, %c8_i32_130 : i32
    %502 = tpu.assume_multiple %501, 8 : i32
    %503 = arith.index_cast %502 : i32 to index
    %c0_131 = arith.constant 0 : index
    %504 = vector.load %arg10[%503, %c0_131] : memref<64x128xf32, #tpu.memory_space<vmem>>, vector<8x128xf32>
    %cst_132 = arith.constant dense<0.000000e+00> : vector<8x128xf32>
    %505 = tpu.matmul %500, %275, %cst_132 {dimension_numbers = #tpu.dot_dimension_numbers<[1], [0], [0], [1], [0, 0, 1, 1], [], []>} : vector<8x32xf32>, vector<32x128xf32>, vector<8x128xf32> -> vector<8x128xf32>
    %506 = arith.addf %504, %505 : vector<8x128xf32>
    %507 = vector.extract_strided_slice %506 {offsets = [0, 0], sizes = [8, 32], strides = [1, 1]} : vector<8x128xf32> to vector<8x32xf32>
    %508 = arith.negf %507 : vector<8x32xf32>
    %509 = math.exp %508 : vector<8x32xf32>
    %cst_133 = arith.constant 1.000000e+00 : f32
    %510 = vector.broadcast %cst_133 : f32 to vector<8x32xf32>
    %511 = arith.addf %510, %509 : vector<8x32xf32>
    %512 = arith.divf %510, %511 : vector<8x32xf32>
    %513 = vector.extract_strided_slice %506 {offsets = [0, 32], sizes = [8, 32], strides = [1, 1]} : vector<8x128xf32> to vector<8x32xf32>
    %514 = arith.negf %513 : vector<8x32xf32>
    %515 = math.exp %514 : vector<8x32xf32>
    %cst_134 = arith.constant 1.000000e+00 : f32
    %516 = vector.broadcast %cst_134 : f32 to vector<8x32xf32>
    %517 = arith.addf %516, %515 : vector<8x32xf32>
    %518 = arith.divf %516, %517 : vector<8x32xf32>
    %519 = vector.extract_strided_slice %506 {offsets = [0, 64], sizes = [8, 32], strides = [1, 1]} : vector<8x128xf32> to vector<8x32xf32>
    %520 = math.tanh %519 : vector<8x32xf32>
    %521 = vector.extract_strided_slice %506 {offsets = [0, 96], sizes = [8, 32], strides = [1, 1]} : vector<8x128xf32> to vector<8x32xf32>
    %522 = arith.negf %521 : vector<8x32xf32>
    %523 = math.exp %522 : vector<8x32xf32>
    %cst_135 = arith.constant 1.000000e+00 : f32
    %524 = vector.broadcast %cst_135 : f32 to vector<8x32xf32>
    %525 = arith.addf %524, %523 : vector<8x32xf32>
    %526 = arith.divf %524, %525 : vector<8x32xf32>
    %527 = arith.mulf %518, %498 : vector<8x32xf32>
    %528 = arith.mulf %512, %520 : vector<8x32xf32>
    %529 = arith.addf %527, %528 : vector<8x32xf32>
    %530 = math.tanh %529 : vector<8x32xf32>
    %531 = arith.mulf %526, %530 : vector<8x32xf32>
    %c8_i32_136 = arith.constant 8 : i32
    %c0_137 = arith.constant 0 : index
    %c0_138 = arith.constant 0 : index
    %532 = vector.load %arg7[%c0_137, %c0_138] : memref<32x4xf32, #tpu.memory_space<vmem>>, vector<32x4xf32>
    %cst_139 = arith.constant dense<0.000000e+00> : vector<8x4xf32>
    %533 = tpu.matmul %531, %532, %cst_139 {dimension_numbers = #tpu.dot_dimension_numbers<[1], [0], [0], [1], [0, 0, 1, 1], [], []>} : vector<8x32xf32>, vector<32x4xf32>, vector<8x4xf32> -> vector<8x4xf32>
    %c0_140 = arith.constant 0 : index
    %c0_141 = arith.constant 0 : index
    %534 = vector.load %arg8[%c0_140, %c0_141] : memref<1x4xf32, #tpu.memory_space<vmem>>, vector<1x4xf32>
    %535 = vector.broadcast %534 : vector<1x4xf32> to vector<8x4xf32>
    %536 = arith.addf %533, %535 : vector<8x4xf32>
    %c0_142 = arith.constant 0 : index
    %c0_143 = arith.constant 0 : index
    %537 = vector.load %arg9[%c0_142, %c0_143] : memref<8x4xf32, #tpu.memory_space<vmem>>, vector<8x4xf32>
    tpu.vector_store %arg9[%c0_142, %c0_143], %536 {strides = array<i32>} : memref<8x4xf32, #tpu.memory_space<vmem>>, vector<8x4xf32>,
    return
  }
}

</mosaic_0001>

<llo_original>
// kernel: tpu_custom_call.1
$region0: #{tpu_custom_call.1}
  #allocation0 [shape = 'u32[]', space=smem, size = 0x4, offset = 0x4, fixed_abs, tag = 'smem constant byte address 0x4 - core index']
  #allocation1 [shape = 'u32[144,128]{1,0:T(1,128)}', space=vmem, size = 0x12000, scoped, tag = 'internal scratch']
  #allocation2 [shape = 'f32[64,128]{1,0:T(8,128)}', space=vmem, size = 0x8000, scoped, tag = 'scratch operand']
  #allocation3 [shape = 'f32[64,32]{1,0:T(8,128)}', space=vmem, size = 0x8000, scoped, tag = 'scratch operand']
  %s0 = inlined_call_operand.vmem [shape: f32[64,8], index: 0, kind: input, shape index: {}]
  %s1 = inlined_call_operand.vmem [shape: f32[8,128], index: 1, kind: input, shape index: {}]
  %s2 = inlined_call_operand.vmem [shape: f32[32,128], index: 2, kind: input, shape index: {}]
  %s3 = inlined_call_operand.vmem [shape: f32[1,128], index: 3, kind: input, shape index: {}]
  %s4 = inlined_call_operand.vmem [shape: f32[32,128], index: 4, kind: input, shape index: {}]
  %s5 = inlined_call_operand.vmem [shape: f32[32,128], index: 5, kind: input, shape index: {}]
  %s6 = inlined_call_operand.vmem [shape: f32[1,128], index: 6, kind: input, shape index: {}]
  %s7 = inlined_call_operand.vmem [shape: f32[32,4], index: 7, kind: input, shape index: {}]
  %s8 = inlined_call_operand.vmem [shape: f32[1,4], index: 8, kind: input, shape index: {}]
  %s9 = inlined_call_operand.vmem [shape: f32[8,4], index: 9, kind: output, shape index: {}]
  %s10 = sld [smem:[#allocation0]]
  $region46: #{tpu_custom_call.1} parent=0
    _
  %s12 = ssub.s32 1, %s10
  %s13 = scalar_select 0, %s12, %s10
  // Predicated region
  $region2: #{tpu_custom_call.1} parent=0 // pred_check
    _
  $region3: #{tpu_custom_call.1} parent=0 // pred_check_branch
    %15 = sbr.rel (0) target = $region5
  $region4: #{tpu_custom_call.1} parent=0 // pred_region
    _
  $region5: #{tpu_custom_call.1} parent=0 // pred_fallthru
    _
  // Predicated region
  $region6: #{tpu_custom_call.1} parent=0 // pred_check
    _
  $region7: #{tpu_custom_call.1} parent=0 // pred_check_branch
    %17 = sbr.rel (0) target = $region9
  $region8: #{tpu_custom_call.1} parent=0 // pred_region
    _
  $region9: #{tpu_custom_call.1} parent=0 // pred_fallthru
    _
  // Predicated region
  $region10: #{tpu_custom_call.1} parent=0 // pred_check
    _
  $region11: #{tpu_custom_call.1} parent=0 // pred_check_branch
    %19 = sbr.rel (0) target = $region13
  $region12: #{tpu_custom_call.1} parent=0 // pred_region
    _
  $region13: #{tpu_custom_call.1} parent=0 // pred_fallthru
    _
  // Predicated region
  $region14: #{tpu_custom_call.1} parent=0 // pred_check
    _
  $region15: #{tpu_custom_call.1} parent=0 // pred_check_branch
    %21 = sbr.rel (0) target = $region17
  $region16: #{tpu_custom_call.1} parent=0 // pred_region
    _
  $region17: #{tpu_custom_call.1} parent=0 // pred_fallthru
    _
  // Predicated region
  $region18: #{tpu_custom_call.1} parent=0 // pred_check
    _
  $region19: #{tpu_custom_call.1} parent=0 // pred_check_branch
    %23 = sbr.rel (0) target = $region21
  $region20: #{tpu_custom_call.1} parent=0 // pred_region
    _
  $region21: #{tpu_custom_call.1} parent=0 // pred_fallthru
    _
  // Predicated region
  $region22: #{tpu_custom_call.1} parent=0 // pred_check
    _
  $region23: #{tpu_custom_call.1} parent=0 // pred_check_branch
    %25 = sbr.rel (0) target = $region25
  $region24: #{tpu_custom_call.1} parent=0 // pred_region
    _
  $region25: #{tpu_custom_call.1} parent=0 // pred_fallthru
    _
  // Predicated region
  $region26: #{tpu_custom_call.1} parent=0 // pred_check
    _
  $region27: #{tpu_custom_call.1} parent=0 // pred_check_branch
    %27 = sbr.rel (0) target = $region29
  $region28: #{tpu_custom_call.1} parent=0 // pred_region
    _
  $region29: #{tpu_custom_call.1} parent=0 // pred_fallthru
    _
  // Predicated region
  $region30: #{tpu_custom_call.1} parent=0 // pred_check
    _
  $region31: #{tpu_custom_call.1} parent=0 // pred_check_branch
    %29 = sbr.rel (0) target = $region33
  $region32: #{tpu_custom_call.1} parent=0 // pred_region
    _
  $region33: #{tpu_custom_call.1} parent=0 // pred_fallthru
    _
  // Predicated region
  $region34: #{tpu_custom_call.1} parent=0 // pred_check
    _
  $region35: #{tpu_custom_call.1} parent=0 // pred_check_branch
    %31 = sbr.rel (0) target = $region37
  $region36: #{tpu_custom_call.1} parent=0 // pred_region
    _
  $region37: #{tpu_custom_call.1} parent=0 // pred_fallthru
    _
  %v32 = vld [vmem:[%s1] sm:$0xff]
  %v33 = vld [vmem:[%s2] sm:$0xff]
  %v34 = vld [vmem:[%s2 + $0x8] sm:$0xff]
  %v35 = vld [vmem:[%s2 + $0x10] sm:$0xff]
  %v36 = vld [vmem:[%s2 + $0x18] sm:$0xff]
  %v37 = vld [vmem:[%s3] sm:$0x1]
  %v38 = vld [vmem:[%s0] sm:$0xff]
  %v39 = vld [vmem:[%s0 + $0x8] sm:$0xff]
  %v40 = vld [vmem:[%s0 + $0x10] sm:$0xff]
  %v41 = vld [vmem:[%s0 + $0x18] sm:$0xff]
  %v42 = vld [vmem:[%s0 + $0x20] sm:$0xff]
  %v43 = vld [vmem:[%s0 + $0x28] sm:$0xff]
  %v44 = vld [vmem:[%s0 + $0x30] sm:$0xff]
  %v45 = vld [vmem:[%s0 + $0x38] sm:$0xff]
  %v47 = vlaneseq
  %v48 = vshrl.u32 %v47, 7
  %v49 = vsub.s32 0, %v48
  %v50 = vrot.slane %v37, %v49
  %vm52 = vcmask 64512
  %v54 = vsel %vm52, %v38, 0
  %v57 = vsel %vm52, %v39, 0
  %v60 = vsel %vm52, %v40, 0
  %v63 = vsel %vm52, %v41, 0
  %v66 = vsel %vm52, %v42, 0
  %v69 = vsel %vm52, %v43, 0
  %v72 = vsel %vm52, %v44, 0
  %v75 = vsel %vm52, %v45, 0
  %77 = vmatprep.subr.mxu0 0.0
  %78 = vmatpush1.msra.mxu0 %v32
  %79 = vmatprep.subr.mxu0 0.0
  %80 = vmatpush1.msra.mxu0 0.0
  %81 = vmatprep.subr.mxu0 0.0
  %82 = vmatpush1.msra.mxu0 0.0
  %83 = vmatprep.subr.mxu0 0.0
  %84 = vmatpush1.msra.mxu0 0.0
  %85 = vmatprep.subr.mxu0 0.0
  %86 = vmatpush1.msra.mxu0 0.0
  %87 = vmatprep.subr.mxu0 0.0
  %88 = vmatpush1.msra.mxu0 0.0
  %89 = vmatprep.subr.mxu0 0.0
  %90 = vmatpush1.msra.mxu0 0.0
  %91 = vmatprep.subr.mxu0 0.0
  %92 = vmatpush1.msra.mxu0 0.0
  %93 = vmatprep.subr.mxu0 0.0
  %94 = vmatpush1.msra.mxu0 0.0
  %95 = vmatprep.subr.mxu0 0.0
  %96 = vmatpush1.msra.mxu0 0.0
  %97 = vmatprep.subr.mxu0 0.0
  %98 = vmatpush1.msra.mxu0 0.0
  %99 = vmatprep.subr.mxu0 0.0
  %100 = vmatpush1.msra.mxu0 0.0
  %101 = vmatprep.subr.mxu0 0.0
  %102 = vmatpush1.msra.mxu0 0.0
  %103 = vmatprep.subr.mxu0 0.0
  %104 = vmatpush1.msra.mxu0 0.0
  %105 = vmatprep.subr.mxu0 0.0
  %106 = vmatpush1.msra.mxu0 0.0
  %107 = vmatprep.subr.mxu0 0.0
  %108 = vmatpush1.msra.mxu0 0.0
  %109 = vmatprep.subr.mxu0 0.0
  %110 = vmatpush1.msra.mxu0 0.0
  %111 = vmatprep.subr.mxu0 0.0
  %112 = vmatpush1.msra.mxu0 0.0
  %113 = vmatprep.subr.mxu0 0.0
  %114 = vmatpush1.msra.mxu0 0.0
  %115 = vmatprep.subr.mxu0 0.0
  %116 = vmatpush1.msra.mxu0 0.0
  %117 = vmatprep.subr.mxu0 0.0
  %118 = vmatpush1.msra.mxu0 0.0
  %119 = vmatprep.subr.mxu0 0.0
  %120 = vmatpush1.msra.mxu0 0.0
  %121 = vmatprep.subr.mxu0 0.0
  %122 = vmatpush1.msra.mxu0 0.0
  %123 = vmatprep.subr.mxu0 0.0
  %124 = vmatpush1.msra.mxu0 0.0
  %125 = vmatprep.subr.mxu0 0.0
  %126 = vmatpush1.msra.mxu0 0.0
  %127 = vmatprep.subr.mxu0 0.0
  %128 = vmatpush1.msra.mxu0 0.0
  %129 = vmatprep.subr.mxu0 0.0
  %130 = vmatpush1.msra.mxu0 0.0
  %131 = vmatprep.subr.mxu0 0.0
  %132 = vmatpush1.msra.mxu0 0.0
  %133 = vmatprep.subr.mxu0 0.0
  %134 = vmatpush1.msra.mxu0 0.0
  %135 = vmatprep.subr.mxu0 0.0
  %136 = vmatpush1.msra.mxu0 0.0
  %137 = vmatprep.subr.mxu0 0.0
  %138 = vmatpush1.msra.mxu0 0.0
  %139 = vmatprep.subr.mxu0 0.0
  %140 = vmatpush1.msra.mxu0 0.0
  %141 = vmatprep.mubr.f32.mxu0 0.0
  %142 = vmatmul.mubr.f32.gmra.mrb[0].mxu0 %v54
  %v143 = vpop.f32.mrb[0].mxu0
  %v144 = vadd.f32 %v50, %v143
  %v145 = vpop.f32.mrb[0].mxu0
  %146 = vmatprep.mubr.f32.mxu0 0.0
  %147 = vmatmul.mubr.f32.gmra.mrb[0].mxu0 %v57
  %v148 = vpop.f32.mrb[0].mxu0
  %v149 = vadd.f32 %v50, %v148
  %v150 = vpop.f32.mrb[0].mxu0
  %151 = vmatprep.mubr.f32.mxu0 0.0
  %152 = vmatmul.mubr.f32.gmra.mrb[0].mxu0 %v60
  %v153 = vpop.f32.mrb[0].mxu0
  %v154 = vadd.f32 %v50, %v153
  %v155 = vpop.f32.mrb[0].mxu0
  %156 = vmatprep.mubr.f32.mxu0 0.0
  %157 = vmatmul.mubr.f32.gmra.mrb[0].mxu0 %v63
  %v158 = vpop.f32.mrb[0].mxu0
  %v159 = vadd.f32 %v50, %v158
  %v160 = vpop.f32.mrb[0].mxu0
  %161 = vmatprep.mubr.f32.mxu0 0.0
  %162 = vmatmul.mubr.f32.gmra.mrb[0].mxu0 %v66
  %v163 = vpop.f32.mrb[0].mxu0
  %v164 = vadd.f32 %v50, %v163
  %v165 = vpop.f32.mrb[0].mxu0
  %166 = vmatprep.mubr.f32.mxu0 0.0
  %167 = vmatmul.mubr.f32.gmra.mrb[0].mxu0 %v69
  %v168 = vpop.f32.mrb[0].mxu0
  %v169 = vadd.f32 %v50, %v168
  %v170 = vpop.f32.mrb[0].mxu0
  %171 = vmatprep.mubr.f32.mxu0 0.0
  %172 = vmatmul.mubr.f32.gmra.mrb[0].mxu0 %v72
  %v173 = vpop.f32.mrb[0].mxu0
  %v174 = vadd.f32 %v50, %v173
  %v175 = vpop.f32.mrb[0].mxu0
  %176 = vmatprep.mubr.f32.mxu0 0.0
  %177 = vmatmul.mubr.f32.gmra.mrb[0].mxu0 %v75
  %v178 = vpop.f32.mrb[0].mxu0
  %v179 = vadd.f32 %v50, %v178
  %v180 = vpop.f32.mrb[0].mxu0
  %181 = vdwg.mxu0
  %182 = vst [vmem:[#allocation2] sm:$0xff] %v144
  %183 = vst [vmem:[#allocation2 + $0x8] sm:$0xff] %v149
  %184 = vst [vmem:[#allocation2 + $0x10] sm:$0xff] %v154
  %185 = vst [vmem:[#allocation2 + $0x18] sm:$0xff] %v159
  %186 = vst [vmem:[#allocation2 + $0x20] sm:$0xff] %v164
  %187 = vst [vmem:[#allocation2 + $0x28] sm:$0xff] %v169
  %188 = vst [vmem:[#allocation2 + $0x30] sm:$0xff] %v174
  %189 = vst [vmem:[#allocation2 + $0x38] sm:$0xff] %v179
  %v190 = vld [vmem:[#allocation2] sm:$0xff]
  %vm191 = vcmask 261120
  %v193 = vsel %vm191, 0.0, 0
  %195 = vmatprep.subr.mxu0 0.0
  %196 = vmatpush1.msra.mxu0 %v33
  %197 = vmatprep.subr.mxu0 0.0
  %198 = vmatpush1.msra.mxu0 %v34
  %199 = vmatprep.subr.mxu0 0.0
  %200 = vmatpush1.msra.mxu0 %v35
  %201 = vmatprep.subr.mxu0 0.0
  %202 = vmatpush1.msra.mxu0 %v36
  %203 = vmatprep.subr.mxu0 0.0
  %204 = vmatpush1.msra.mxu0 0.0
  %205 = vmatprep.subr.mxu0 0.0
  %206 = vmatpush1.msra.mxu0 0.0
  %207 = vmatprep.subr.mxu0 0.0
  %208 = vmatpush1.msra.mxu0 0.0
  %209 = vmatprep.subr.mxu0 0.0
  %210 = vmatpush1.msra.mxu0 0.0
  %211 = vmatprep.subr.mxu0 0.0
  %212 = vmatpush1.msra.mxu0 0.0
  %213 = vmatprep.subr.mxu0 0.0
  %214 = vmatpush1.msra.mxu0 0.0
  %215 = vmatprep.subr.mxu0 0.0
  %216 = vmatpush1.msra.mxu0 0.0
  %217 = vmatprep.subr.mxu0 0.0
  %218 = vmatpush1.msra.mxu0 0.0
  %219 = vmatprep.subr.mxu0 0.0
  %220 = vmatpush1.msra.mxu0 0.0
  %221 = vmatprep.subr.mxu0 0.0
  %222 = vmatpush1.msra.mxu0 0.0
  %223 = vmatprep.subr.mxu0 0.0
  %224 = vmatpush1.msra.mxu0 0.0
  %225 = vmatprep.subr.mxu0 0.0
  %226 = vmatpush1.msra.mxu0 0.0
  %227 = vmatprep.subr.mxu0 0.0
  %228 = vmatpush1.msra.mxu0 0.0
  %229 = vmatprep.subr.mxu0 0.0
  %230 = vmatpush1.msra.mxu0 0.0
  %231 = vmatprep.subr.mxu0 0.0
  %232 = vmatpush1.msra.mxu0 0.0
  %233 = vmatprep.subr.mxu0 0.0
  %234 = vmatpush1.msra.mxu0 0.0
  %235 = vmatprep.subr.mxu0 0.0
  %236 = vmatpush1.msra.mxu0 0.0
  %237 = vmatprep.subr.mxu0 0.0
  %238 = vmatpush1.msra.mxu0 0.0
  %239 = vmatprep.subr.mxu0 0.0
  %240 = vmatpush1.msra.mxu0 0.0
  %241 = vmatprep.subr.mxu0 0.0
  %242 = vmatpush1.msra.mxu0 0.0
  %243 = vmatprep.subr.mxu0 0.0
  %244 = vmatpush1.msra.mxu0 0.0
  %245 = vmatprep.subr.mxu0 0.0
  %246 = vmatpush1.msra.mxu0 0.0
  %247 = vmatprep.subr.mxu0 0.0
  %248 = vmatpush1.msra.mxu0 0.0
  %249 = vmatprep.subr.mxu0 0.0
  %250 = vmatpush1.msra.mxu0 0.0
  %251 = vmatprep.subr.mxu0 0.0
  %252 = vmatpush1.msra.mxu0 0.0
  %253 = vmatprep.subr.mxu0 0.0
  %254 = vmatpush1.msra.mxu0 0.0
  %255 = vmatprep.subr.mxu0 0.0
  %256 = vmatpush1.msra.mxu0 0.0
  %257 = vmatprep.subr.mxu0 0.0
  %258 = vmatpush1.msra.mxu0 0.0
  %259 = vmatprep.mubr.f32.mxu0 0.0
  %260 = vmatmul.mubr.f32.gmra.mrb[0].mxu0 %v193
  %v261 = vpop.f32.mrb[0].mxu0
  %v262 = vadd.f32 0.0, %v261
  %v263 = vpop.f32.mrb[0].mxu0
  %264 = vdwg.mxu0
  %v265 = vadd.f32 %v190, %v262
  %v266 = vxor.u32 %v265, 2147483648
  %v267 = vmul.f32 %v266, 1.442695
  %v268 = vpow.pop %v267
  %v269 = vadd.f32 %v268, 1.0
  %v270 = vrcp.pop %v269
  %v271 = vmul.f32 1.0, %v270
  %v272 = vtanh.pop %v265
  %v273 = vmul.f32 %v271, 0.0
  %275 = vrot.lane.b32.xlu0 %v272, 64
  %v276 = vpop.permute.xlu0 %275
  %v278 = vmul.f32 %v271, %v276
  %280 = vrot.lane.b32.xlu0 %v278, 32
  %v281 = vpop.permute.xlu0 %280
  %v283 = vadd.f32 %v273, %v281
  %v284 = vtanh.pop %v283
  %286 = vrot.lane.b32.xlu0 %v284, 64
  %v287 = vpop.permute.xlu0 %286
  %v289 = vmul.f32 %v271, %v287
  %291 = vrot.lane.b32.xlu0 %v289, 32
  %v292 = vpop.permute.xlu0 %291
  %294 = vst.msk [vmem:[#allocation3] sm:$0xff] %vm191, %v292
  %s295 = scalar_lea.vmem [#allocation2], 8
  %v296 = vld [vmem:[%s295] sm:$0xff]
  %v297 = vsel %vm191, %v292, 0
  %299 = vmatprep.subr.mxu0 0.0
  %300 = vmatpush1.msra.mxu0 %v33
  %301 = vmatprep.subr.mxu0 0.0
  %302 = vmatpush1.msra.mxu0 %v34
  %303 = vmatprep.subr.mxu0 0.0
  %304 = vmatpush1.msra.mxu0 %v35
  %305 = vmatprep.subr.mxu0 0.0
  %306 = vmatpush1.msra.mxu0 %v36
  %307 = vmatprep.subr.mxu0 0.0
  %308 = vmatpush1.msra.mxu0 0.0
  %309 = vmatprep.subr.mxu0 0.0
  %310 = vmatpush1.msra.mxu0 0.0
  %311 = vmatprep.subr.mxu0 0.0
  %312 = vmatpush1.msra.mxu0 0.0
  %313 = vmatprep.subr.mxu0 0.0
  %314 = vmatpush1.msra.mxu0 0.0
  %315 = vmatprep.subr.mxu0 0.0
  %316 = vmatpush1.msra.mxu0 0.0
  %317 = vmatprep.subr.mxu0 0.0
  %318 = vmatpush1.msra.mxu0 0.0
  %319 = vmatprep.subr.mxu0 0.0
  %320 = vmatpush1.msra.mxu0 0.0
  %321 = vmatprep.subr.mxu0 0.0
  %322 = vmatpush1.msra.mxu0 0.0
  %323 = vmatprep.subr.mxu0 0.0
  %324 = vmatpush1.msra.mxu0 0.0
  %325 = vmatprep.subr.mxu0 0.0
  %326 = vmatpush1.msra.mxu0 0.0
  %327 = vmatprep.subr.mxu0 0.0
  %328 = vmatpush1.msra.mxu0 0.0
  %329 = vmatprep.subr.mxu0 0.0
  %330 = vmatpush1.msra.mxu0 0.0
  %331 = vmatprep.subr.mxu0 0.0
  %332 = vmatpush1.msra.mxu0 0.0
  %333 = vmatprep.subr.mxu0 0.0
  %334 = vmatpush1.msra.mxu0 0.0
  %335 = vmatprep.subr.mxu0 0.0
  %336 = vmatpush1.msra.mxu0 0.0
  %337 = vmatprep.subr.mxu0 0.0
  %338 = vmatpush1.msra.mxu0 0.0
  %339 = vmatprep.subr.mxu0 0.0
  %340 = vmatpush1.msra.mxu0 0.0
  %341 = vmatprep.subr.mxu0 0.0
  %342 = vmatpush1.msra.mxu0 0.0
  %343 = vmatprep.subr.mxu0 0.0
  %344 = vmatpush1.msra.mxu0 0.0
  %345 = vmatprep.subr.mxu0 0.0
  %346 = vmatpush1.msra.mxu0 0.0
  %347 = vmatprep.subr.mxu0 0.0
  %348 = vmatpush1.msra.mxu0 0.0
  %349 = vmatprep.subr.mxu0 0.0
  %350 = vmatpush1.msra.mxu0 0.0
  %351 = vmatprep.subr.mxu0 0.0
  %352 = vmatpush1.msra.mxu0 0.0
  %353 = vmatprep.subr.mxu0 0.0
  %354 = vmatpush1.msra.mxu0 0.0
  %355 = vmatprep.subr.mxu0 0.0
  %356 = vmatpush1.msra.mxu0 0.0
  %357 = vmatprep.subr.mxu0 0.0
  %358 = vmatpush1.msra.mxu0 0.0
  %359 = vmatprep.subr.mxu0 0.0
  %360 = vmatpush1.msra.mxu0 0.0
  %361 = vmatprep.subr.mxu0 0.0
  %362 = vmatpush1.msra.mxu0 0.0
  %363 = vmatprep.mubr.f32.mxu0 0.0
  %364 = vmatmul.mubr.f32.gmra.mrb[0].mxu0 %v297
  %v365 = vpop.f32.mrb[0].mxu0
  %v366 = vadd.f32 0.0, %v365
  %v367 = vpop.f32.mrb[0].mxu0
  %368 = vdwg.mxu0
  %v369 = vadd.f32 %v296, %v366
  %v370 = vxor.u32 %v369, 2147483648
  %v371 = vmul.f32 %v370, 1.442695
  %v372 = vpow.pop %v371
  %v373 = vadd.f32 %v372, 1.0
  %v374 = vrcp.pop %v373
  %v375 = vmul.f32 1.0, %v374
  %v376 = vtanh.pop %v369
  %v377 = vmul.f32 %v375, %v283
  %379 = vrot.lane.b32.xlu0 %v376, 64
  %v380 = vpop.permute.xlu0 %379
  %v382 = vmul.f32 %v375, %v380
  %384 = vrot.lane.b32.xlu0 %v382, 32
  %v385 = vpop.permute.xlu0 %384
  %v387 = vadd.f32 %v377, %v385
  %v388 = vtanh.pop %v387
  %390 = vrot.lane.b32.xlu0 %v388, 64
  %v391 = vpop.permute.xlu0 %390
  %v393 = vmul.f32 %v375, %v391
  %395 = vrot.lane.b32.xlu0 %v393, 32
  %v396 = vpop.permute.xlu0 %395
  %s398 = scalar_lea.vmem [#allocation3], 8
  %399 = vst.msk [vmem:[%s398] sm:$0xff] %vm191, %v396
  %s400 = scalar_lea.vmem [#allocation2], 16
  %v401 = vld [vmem:[%s400] sm:$0xff]
  %v402 = vsel %vm191, %v396, 0
  %404 = vmatprep.subr.mxu0 0.0
  %405 = vmatpush1.msra.mxu0 %v33
  %406 = vmatprep.subr.mxu0 0.0
  %407 = vmatpush1.msra.mxu0 %v34
  %408 = vmatprep.subr.mxu0 0.0
  %409 = vmatpush1.msra.mxu0 %v35
  %410 = vmatprep.subr.mxu0 0.0
  %411 = vmatpush1.msra.mxu0 %v36
  %412 = vmatprep.subr.mxu0 0.0
  %413 = vmatpush1.msra.mxu0 0.0
  %414 = vmatprep.subr.mxu0 0.0
  %415 = vmatpush1.msra.mxu0 0.0
  %416 = vmatprep.subr.mxu0 0.0
  %417 = vmatpush1.msra.mxu0 0.0
  %418 = vmatprep.subr.mxu0 0.0
  %419 = vmatpush1.msra.mxu0 0.0
  %420 = vmatprep.subr.mxu0 0.0
  %421 = vmatpush1.msra.mxu0 0.0
  %422 = vmatprep.subr.mxu0 0.0
  %423 = vmatpush1.msra.mxu0 0.0
  %424 = vmatprep.subr.mxu0 0.0
  %425 = vmatpush1.msra.mxu0 0.0
  %426 = vmatprep.subr.mxu0 0.0
  %427 = vmatpush1.msra.mxu0 0.0
  %428 = vmatprep.subr.mxu0 0.0
  %429 = vmatpush1.msra.mxu0 0.0
  %430 = vmatprep.subr.mxu0 0.0
  %431 = vmatpush1.msra.mxu0 0.0
  %432 = vmatprep.subr.mxu0 0.0
  %433 = vmatpush1.msra.mxu0 0.0
  %434 = vmatprep.subr.mxu0 0.0
  %435 = vmatpush1.msra.mxu0 0.0
  %436 = vmatprep.subr.mxu0 0.0
  %437 = vmatpush1.msra.mxu0 0.0
  %438 = vmatprep.subr.mxu0 0.0
  %439 = vmatpush1.msra.mxu0 0.0
  %440 = vmatprep.subr.mxu0 0.0
  %441 = vmatpush1.msra.mxu0 0.0
  %442 = vmatprep.subr.mxu0 0.0
  %443 = vmatpush1.msra.mxu0 0.0
  %444 = vmatprep.subr.mxu0 0.0
  %445 = vmatpush1.msra.mxu0 0.0
  %446 = vmatprep.subr.mxu0 0.0
  %447 = vmatpush1.msra.mxu0 0.0
  %448 = vmatprep.subr.mxu0 0.0
  %449 = vmatpush1.msra.mxu0 0.0
  %450 = vmatprep.subr.mxu0 0.0
  %451 = vmatpush1.msra.mxu0 0.0
  %452 = vmatprep.subr.mxu0 0.0
  %453 = vmatpush1.msra.mxu0 0.0
  %454 = vmatprep.subr.mxu0 0.0
  %455 = vmatpush1.msra.mxu0 0.0
  %456 = vmatprep.subr.mxu0 0.0
  %457 = vmatpush1.msra.mxu0 0.0
  %458 = vmatprep.subr.mxu0 0.0
  %459 = vmatpush1.msra.mxu0 0.0
  %460 = vmatprep.subr.mxu0 0.0
  %461 = vmatpush1.msra.mxu0 0.0
  %462 = vmatprep.subr.mxu0 0.0
  %463 = vmatpush1.msra.mxu0 0.0
  %464 = vmatprep.subr.mxu0 0.0
  %465 = vmatpush1.msra.mxu0 0.0
  %466 = vmatprep.subr.mxu0 0.0
  %467 = vmatpush1.msra.mxu0 0.0
  %468 = vmatprep.mubr.f32.mxu0 0.0
  %469 = vmatmul.mubr.f32.gmra.mrb[0].mxu0 %v402
  %v470 = vpop.f32.mrb[0].mxu0
  %v471 = vadd.f32 0.0, %v470
  %v472 = vpop.f32.mrb[0].mxu0
  %473 = vdwg.mxu0
  %v474 = vadd.f32 %v401, %v471
  %v475 = vxor.u32 %v474, 2147483648
  %v476 = vmul.f32 %v475, 1.442695
  %v477 = vpow.pop %v476
  %v478 = vadd.f32 %v477, 1.0
  %v479 = vrcp.pop %v478
  %v480 = vmul.f32 1.0, %v479
  %v481 = vtanh.pop %v474
  %v482 = vmul.f32 %v480, %v387
  %484 = vrot.lane.b32.xlu0 %v481, 64
  %v485 = vpop.permute.xlu0 %484
  %v487 = vmul.f32 %v480, %v485
  %489 = vrot.lane.b32.xlu0 %v487, 32
  %v490 = vpop.permute.xlu0 %489
  %v492 = vadd.f32 %v482, %v490
  %v493 = vtanh.pop %v492
  %495 = vrot.lane.b32.xlu0 %v493, 64
  %v496 = vpop.permute.xlu0 %495
  %v498 = vmul.f32 %v480, %v496
  %500 = vrot.lane.b32.xlu0 %v498, 32
  %v501 = vpop.permute.xlu0 %500
  %s503 = scalar_lea.vmem [#allocation3], 16
  %504 = vst.msk [vmem:[%s503] sm:$0xff] %vm191, %v501
  %s505 = scalar_lea.vmem [#allocation2], 24
  %v506 = vld [vmem:[%s505] sm:$0xff]
  %v507 = vsel %vm191, %v501, 0
  %509 = vmatprep.subr.mxu0 0.0
  %510 = vmatpush1.msra.mxu0 %v33
  %511 = vmatprep.subr.mxu0 0.0
  %512 = vmatpush1.msra.mxu0 %v34
  %513 = vmatprep.subr.mxu0 0.0
  %514 = vmatpush1.msra.mxu0 %v35
  %515 = vmatprep.subr.mxu0 0.0
  %516 = vmatpush1.msra.mxu0 %v36
  %517 = vmatprep.subr.mxu0 0.0
  %518 = vmatpush1.msra.mxu0 0.0
  %519 = vmatprep.subr.mxu0 0.0
  %520 = vmatpush1.msra.mxu0 0.0
  %521 = vmatprep.subr.mxu0 0.0
  %522 = vmatpush1.msra.mxu0 0.0
  %523 = vmatprep.subr.mxu0 0.0
  %524 = vmatpush1.msra.mxu0 0.0
  %525 = vmatprep.subr.mxu0 0.0
  %526 = vmatpush1.msra.mxu0 0.0
  %527 = vmatprep.subr.mxu0 0.0
  %528 = vmatpush1.msra.mxu0 0.0
  %529 = vmatprep.subr.mxu0 0.0
  %530 = vmatpush1.msra.mxu0 0.0
  %531 = vmatprep.subr.mxu0 0.0
  %532 = vmatpush1.msra.mxu0 0.0
  %533 = vmatprep.subr.mxu0 0.0
  %534 = vmatpush1.msra.mxu0 0.0
  %535 = vmatprep.subr.mxu0 0.0
  %536 = vmatpush1.msra.mxu0 0.0
  %537 = vmatprep.subr.mxu0 0.0
  %538 = vmatpush1.msra.mxu0 0.0
  %539 = vmatprep.subr.mxu0 0.0
  %540 = vmatpush1.msra.mxu0 0.0
  %541 = vmatprep.subr.mxu0 0.0
  %542 = vmatpush1.msra.mxu0 0.0
  %543 = vmatprep.subr.mxu0 0.0
  %544 = vmatpush1.msra.mxu0 0.0
  %545 = vmatprep.subr.mxu0 0.0
  %546 = vmatpush1.msra.mxu0 0.0
  %547 = vmatprep.subr.mxu0 0.0
  %548 = vmatpush1.msra.mxu0 0.0
  %549 = vmatprep.subr.mxu0 0.0
  %550 = vmatpush1.msra.mxu0 0.0
  %551 = vmatprep.subr.mxu0 0.0
  %552 = vmatpush1.msra.mxu0 0.0
  %553 = vmatprep.subr.mxu0 0.0
  %554 = vmatpush1.msra.mxu0 0.0
  %555 = vmatprep.subr.mxu0 0.0
  %556 = vmatpush1.msra.mxu0 0.0
  %557 = vmatprep.subr.mxu0 0.0
  %558 = vmatpush1.msra.mxu0 0.0
  %559 = vmatprep.subr.mxu0 0.0
  %560 = vmatpush1.msra.mxu0 0.0
  %561 = vmatprep.subr.mxu0 0.0
  %562 = vmatpush1.msra.mxu0 0.0
  %563 = vmatprep.subr.mxu0 0.0
  %564 = vmatpush1.msra.mxu0 0.0
  %565 = vmatprep.subr.mxu0 0.0
  %566 = vmatpush1.msra.mxu0 0.0
  %567 = vmatprep.subr.mxu0 0.0
  %568 = vmatpush1.msra.mxu0 0.0
  %569 = vmatprep.subr.mxu0 0.0
  %570 = vmatpush1.msra.mxu0 0.0
  %571 = vmatprep.subr.mxu0 0.0
  %572 = vmatpush1.msra.mxu0 0.0
  %573 = vmatprep.mubr.f32.mxu0 0.0
  %574 = vmatmul.mubr.f32.gmra.mrb[0].mxu0 %v507
  %v575 = vpop.f32.mrb[0].mxu0
  %v576 = vadd.f32 0.0, %v575
  %v577 = vpop.f32.mrb[0].mxu0
  %578 = vdwg.mxu0
  %v579 = vadd.f32 %v506, %v576
  %v580 = vxor.u32 %v579, 2147483648
  %v581 = vmul.f32 %v580, 1.442695
  %v582 = vpow.pop %v581
  %v583 = vadd.f32 %v582, 1.0
  %v584 = vrcp.pop %v583
  %v585 = vmul.f32 1.0, %v584
  %v586 = vtanh.pop %v579
  %v587 = vmul.f32 %v585, %v492
  %589 = vrot.lane.b32.xlu0 %v586, 64
  %v590 = vpop.permute.xlu0 %589
  %v592 = vmul.f32 %v585, %v590
  %594 = vrot.lane.b32.xlu0 %v592, 32
  %v595 = vpop.permute.xlu0 %594
  %v597 = vadd.f32 %v587, %v595
  %v598 = vtanh.pop %v597
  %600 = vrot.lane.b32.xlu0 %v598, 64
  %v601 = vpop.permute.xlu0 %600
  %v603 = vmul.f32 %v585, %v601
  %605 = vrot.lane.b32.xlu0 %v603, 32
  %v606 = vpop.permute.xlu0 %605
  %s608 = scalar_lea.vmem [#allocation3], 24
  %609 = vst.msk [vmem:[%s608] sm:$0xff] %vm191, %v606
  %s610 = scalar_lea.vmem [#allocation2], 32
  %v611 = vld [vmem:[%s610] sm:$0xff]
  %v612 = vsel %vm191, %v606, 0
  %614 = vmatprep.subr.mxu0 0.0
  %615 = vmatpush1.msra.mxu0 %v33
  %616 = vmatprep.subr.mxu0 0.0
  %617 = vmatpush1.msra.mxu0 %v34
  %618 = vmatprep.subr.mxu0 0.0
  %619 = vmatpush1.msra.mxu0 %v35
  %620 = vmatprep.subr.mxu0 0.0
  %621 = vmatpush1.msra.mxu0 %v36
  %622 = vmatprep.subr.mxu0 0.0
  %623 = vmatpush1.msra.mxu0 0.0
  %624 = vmatprep.subr.mxu0 0.0
  %625 = vmatpush1.msra.mxu0 0.0
  %626 = vmatprep.subr.mxu0 0.0
  %627 = vmatpush1.msra.mxu0 0.0
  %628 = vmatprep.subr.mxu0 0.0
  %629 = vmatpush1.msra.mxu0 0.0
  %630 = vmatprep.subr.mxu0 0.0
  %631 = vmatpush1.msra.mxu0 0.0
  %632 = vmatprep.subr.mxu0 0.0
  %633 = vmatpush1.msra.mxu0 0.0
  %634 = vmatprep.subr.mxu0 0.0
  %635 = vmatpush1.msra.mxu0 0.0
  %636 = vmatprep.subr.mxu0 0.0
  %637 = vmatpush1.msra.mxu0 0.0
  %638 = vmatprep.subr.mxu0 0.0
  %639 = vmatpush1.msra.mxu0 0.0
  %640 = vmatprep.subr.mxu0 0.0
  %641 = vmatpush1.msra.mxu0 0.0
  %642 = vmatprep.subr.mxu0 0.0
  %643 = vmatpush1.msra.mxu0 0.0
  %644 = vmatprep.subr.mxu0 0.0
  %645 = vmatpush1.msra.mxu0 0.0
  %646 = vmatprep.subr.mxu0 0.0
  %647 = vmatpush1.msra.mxu0 0.0
  %648 = vmatprep.subr.mxu0 0.0
  %649 = vmatpush1.msra.mxu0 0.0
  %650 = vmatprep.subr.mxu0 0.0
  %651 = vmatpush1.msra.mxu0 0.0
  %652 = vmatprep.subr.mxu0 0.0
  %653 = vmatpush1.msra.mxu0 0.0
  %654 = vmatprep.subr.mxu0 0.0
  %655 = vmatpush1.msra.mxu0 0.0
  %656 = vmatprep.subr.mxu0 0.0
  %657 = vmatpush1.msra.mxu0 0.0
  %658 = vmatprep.subr.mxu0 0.0
  %659 = vmatpush1.msra.mxu0 0.0
  %660 = vmatprep.subr.mxu0 0.0
  %661 = vmatpush1.msra.mxu0 0.0
  %662 = vmatprep.subr.mxu0 0.0
  %663 = vmatpush1.msra.mxu0 0.0
  %664 = vmatprep.subr.mxu0 0.0
  %665 = vmatpush1.msra.mxu0 0.0
  %666 = vmatprep.subr.mxu0 0.0
  %667 = vmatpush1.msra.mxu0 0.0
  %668 = vmatprep.subr.mxu0 0.0
  %669 = vmatpush1.msra.mxu0 0.0
  %670 = vmatprep.subr.mxu0 0.0
  %671 = vmatpush1.msra.mxu0 0.0
  %672 = vmatprep.subr.mxu0 0.0
  %673 = vmatpush1.msra.mxu0 0.0
  %674 = vmatprep.subr.mxu0 0.0
  %675 = vmatpush1.msra.mxu0 0.0
  %676 = vmatprep.subr.mxu0 0.0
  %677 = vmatpush1.msra.mxu0 0.0
  %678 = vmatprep.mubr.f32.mxu0 0.0
  %679 = vmatmul.mubr.f32.gmra.mrb[0].mxu0 %v612
  %v680 = vpop.f32.mrb[0].mxu0
  %v681 = vadd.f32 0.0, %v680
  %v682 = vpop.f32.mrb[0].mxu0
  %683 = vdwg.mxu0
  %v684 = vadd.f32 %v611, %v681
  %v685 = vxor.u32 %v684, 2147483648
  %v686 = vmul.f32 %v685, 1.442695
  %v687 = vpow.pop %v686
  %v688 = vadd.f32 %v687, 1.0
  %v689 = vrcp.pop %v688
  %v690 = vmul.f32 1.0, %v689
  %v691 = vtanh.pop %v684
  %v692 = vmul.f32 %v690, %v597
  %694 = vrot.lane.b32.xlu0 %v691, 64
  %v695 = vpop.permute.xlu0 %694
  %v697 = vmul.f32 %v690, %v695
  %699 = vrot.lane.b32.xlu0 %v697, 32
  %v700 = vpop.permute.xlu0 %699
  %v702 = vadd.f32 %v692, %v700
  %v703 = vtanh.pop %v702
  %705 = vrot.lane.b32.xlu0 %v703, 64
  %v706 = vpop.permute.xlu0 %705
  %v708 = vmul.f32 %v690, %v706
  %710 = vrot.lane.b32.xlu0 %v708, 32
  %v711 = vpop.permute.xlu0 %710
  %s713 = scalar_lea.vmem [#allocation3], 32
  %714 = vst.msk [vmem:[%s713] sm:$0xff] %vm191, %v711
  %s715 = scalar_lea.vmem [#allocation2], 40
  %v716 = vld [vmem:[%s715] sm:$0xff]
  %v717 = vsel %vm191, %v711, 0
  %719 = vmatprep.subr.mxu0 0.0
  %720 = vmatpush1.msra.mxu0 %v33
  %721 = vmatprep.subr.mxu0 0.0
  %722 = vmatpush1.msra.mxu0 %v34
  %723 = vmatprep.subr.mxu0 0.0
  %724 = vmatpush1.msra.mxu0 %v35
  %725 = vmatprep.subr.mxu0 0.0
  %726 = vmatpush1.msra.mxu0 %v36
  %727 = vmatprep.subr.mxu0 0.0
  %728 = vmatpush1.msra.mxu0 0.0
  %729 = vmatprep.subr.mxu0 0.0
  %730 = vmatpush1.msra.mxu0 0.0
  %731 = vmatprep.subr.mxu0 0.0
  %732 = vmatpush1.msra.mxu0 0.0
  %733 = vmatprep.subr.mxu0 0.0
  %734 = vmatpush1.msra.mxu0 0.0
  %735 = vmatprep.subr.mxu0 0.0
  %736 = vmatpush1.msra.mxu0 0.0
  %737 = vmatprep.subr.mxu0 0.0
  %738 = vmatpush1.msra.mxu0 0.0
  %739 = vmatprep.subr.mxu0 0.0
  %740 = vmatpush1.msra.mxu0 0.0
  %741 = vmatprep.subr.mxu0 0.0
  %742 = vmatpush1.msra.mxu0 0.0
  %743 = vmatprep.subr.mxu0 0.0
  %744 = vmatpush1.msra.mxu0 0.0
  %745 = vmatprep.subr.mxu0 0.0
  %746 = vmatpush1.msra.mxu0 0.0
  %747 = vmatprep.subr.mxu0 0.0
  %748 = vmatpush1.msra.mxu0 0.0
  %749 = vmatprep.subr.mxu0 0.0
  %750 = vmatpush1.msra.mxu0 0.0
  %751 = vmatprep.subr.mxu0 0.0
  %752 = vmatpush1.msra.mxu0 0.0
  %753 = vmatprep.subr.mxu0 0.0
  %754 = vmatpush1.msra.mxu0 0.0
  %755 = vmatprep.subr.mxu0 0.0
  %756 = vmatpush1.msra.mxu0 0.0
  %757 = vmatprep.subr.mxu0 0.0
  %758 = vmatpush1.msra.mxu0 0.0
  %759 = vmatprep.subr.mxu0 0.0
  %760 = vmatpush1.msra.mxu0 0.0
  %761 = vmatprep.subr.mxu0 0.0
  %762 = vmatpush1.msra.mxu0 0.0
  %763 = vmatprep.subr.mxu0 0.0
  %764 = vmatpush1.msra.mxu0 0.0
  %765 = vmatprep.subr.mxu0 0.0
  %766 = vmatpush1.msra.mxu0 0.0
  %767 = vmatprep.subr.mxu0 0.0
  %768 = vmatpush1.msra.mxu0 0.0
  %769 = vmatprep.subr.mxu0 0.0
  %770 = vmatpush1.msra.mxu0 0.0
  %771 = vmatprep.subr.mxu0 0.0
  %772 = vmatpush1.msra.mxu0 0.0
  %773 = vmatprep.subr.mxu0 0.0
  %774 = vmatpush1.msra.mxu0 0.0
  %775 = vmatprep.subr.mxu0 0.0
  %776 = vmatpush1.msra.mxu0 0.0
  %777 = vmatprep.subr.mxu0 0.0
  %778 = vmatpush1.msra.mxu0 0.0
  %779 = vmatprep.subr.mxu0 0.0
  %780 = vmatpush1.msra.mxu0 0.0
  %781 = vmatprep.subr.mxu0 0.0
  %782 = vmatpush1.msra.mxu0 0.0
  %783 = vmatprep.mubr.f32.mxu0 0.0
  %784 = vmatmul.mubr.f32.gmra.mrb[0].mxu0 %v717
  %v785 = vpop.f32.mrb[0].mxu0
  %v786 = vadd.f32 0.0, %v785
  %v787 = vpop.f32.mrb[0].mxu0
  %788 = vdwg.mxu0
  %v789 = vadd.f32 %v716, %v786
  %v790 = vxor.u32 %v789, 2147483648
  %v791 = vmul.f32 %v790, 1.442695
  %v792 = vpow.pop %v791
  %v793 = vadd.f32 %v792, 1.0
  %v794 = vrcp.pop %v793
  %v795 = vmul.f32 1.0, %v794
  %v796 = vtanh.pop %v789
  %v797 = vmul.f32 %v795, %v702
  %799 = vrot.lane.b32.xlu0 %v796, 64
  %v800 = vpop.permute.xlu0 %799
  %v802 = vmul.f32 %v795, %v800
  %804 = vrot.lane.b32.xlu0 %v802, 32
  %v805 = vpop.permute.xlu0 %804
  %v807 = vadd.f32 %v797, %v805
  %v808 = vtanh.pop %v807
  %810 = vrot.lane.b32.xlu0 %v808, 64
  %v811 = vpop.permute.xlu0 %810
  %v813 = vmul.f32 %v795, %v811
  %815 = vrot.lane.b32.xlu0 %v813, 32
  %v816 = vpop.permute.xlu0 %815
  %s818 = scalar_lea.vmem [#allocation3], 40
  %819 = vst.msk [vmem:[%s818] sm:$0xff] %vm191, %v816
  %s820 = scalar_lea.vmem [#allocation2], 48
  %v821 = vld [vmem:[%s820] sm:$0xff]
  %v822 = vsel %vm191, %v816, 0
  %824 = vmatprep.subr.mxu0 0.0
  %825 = vmatpush1.msra.mxu0 %v33
  %826 = vmatprep.subr.mxu0 0.0
  %827 = vmatpush1.msra.mxu0 %v34
  %828 = vmatprep.subr.mxu0 0.0
  %829 = vmatpush1.msra.mxu0 %v35
  %830 = vmatprep.subr.mxu0 0.0
  %831 = vmatpush1.msra.mxu0 %v36
  %832 = vmatprep.subr.mxu0 0.0
  %833 = vmatpush1.msra.mxu0 0.0
  %834 = vmatprep.subr.mxu0 0.0
  %835 = vmatpush1.msra.mxu0 0.0
  %836 = vmatprep.subr.mxu0 0.0
  %837 = vmatpush1.msra.mxu0 0.0
  %838 = vmatprep.subr.mxu0 0.0
  %839 = vmatpush1.msra.mxu0 0.0
  %840 = vmatprep.subr.mxu0 0.0
  %841 = vmatpush1.msra.mxu0 0.0
  %842 = vmatprep.subr.mxu0 0.0
  %843 = vmatpush1.msra.mxu0 0.0
  %844 = vmatprep.subr.mxu0 0.0
  %845 = vmatpush1.msra.mxu0 0.0
  %846 = vmatprep.subr.mxu0 0.0
  %847 = vmatpush1.msra.mxu0 0.0
  %848 = vmatprep.subr.mxu0 0.0
  %849 = vmatpush1.msra.mxu0 0.0
  %850 = vmatprep.subr.mxu0 0.0
  %851 = vmatpush1.msra.mxu0 0.0
  %852 = vmatprep.subr.mxu0 0.0
  %853 = vmatpush1.msra.mxu0 0.0
  %854 = vmatprep.subr.mxu0 0.0
  %855 = vmatpush1.msra.mxu0 0.0
  %856 = vmatprep.subr.mxu0 0.0
  %857 = vmatpush1.msra.mxu0 0.0
  %858 = vmatprep.subr.mxu0 0.0
  %859 = vmatpush1.msra.mxu0 0.0
  %860 = vmatprep.subr.mxu0 0.0
  %861 = vmatpush1.msra.mxu0 0.0
  %862 = vmatprep.subr.mxu0 0.0
  %863 = vmatpush1.msra.mxu0 0.0
  %864 = vmatprep.subr.mxu0 0.0
  %865 = vmatpush1.msra.mxu0 0.0
  %866 = vmatprep.subr.mxu0 0.0
  %867 = vmatpush1.msra.mxu0 0.0
  %868 = vmatprep.subr.mxu0 0.0
  %869 = vmatpush1.msra.mxu0 0.0
  %870 = vmatprep.subr.mxu0 0.0
  %871 = vmatpush1.msra.mxu0 0.0
  %872 = vmatprep.subr.mxu0 0.0
  %873 = vmatpush1.msra.mxu0 0.0
  %874 = vmatprep.subr.mxu0 0.0
  %875 = vmatpush1.msra.mxu0 0.0
  %876 = vmatprep.subr.mxu0 0.0
  %877 = vmatpush1.msra.mxu0 0.0
  %878 = vmatprep.subr.mxu0 0.0
  %879 = vmatpush1.msra.mxu0 0.0
  %880 = vmatprep.subr.mxu0 0.0
  %881 = vmatpush1.msra.mxu0 0.0
  %882 = vmatprep.subr.mxu0 0.0
  %883 = vmatpush1.msra.mxu0 0.0
  %884 = vmatprep.subr.mxu0 0.0
  %885 = vmatpush1.msra.mxu0 0.0
  %886 = vmatprep.subr.mxu0 0.0
  %887 = vmatpush1.msra.mxu0 0.0
  %888 = vmatprep.mubr.f32.mxu0 0.0
  %889 = vmatmul.mubr.f32.gmra.mrb[0].mxu0 %v822
  %v890 = vpop.f32.mrb[0].mxu0
  %v891 = vadd.f32 0.0, %v890
  %v892 = vpop.f32.mrb[0].mxu0
  %893 = vdwg.mxu0
  %v894 = vadd.f32 %v821, %v891
  %v895 = vxor.u32 %v894, 2147483648
  %v896 = vmul.f32 %v895, 1.442695
  %v897 = vpow.pop %v896
  %v898 = vadd.f32 %v897, 1.0
  %v899 = vrcp.pop %v898
  %v900 = vmul.f32 1.0, %v899
  %v901 = vtanh.pop %v894
  %v902 = vmul.f32 %v900, %v807
  %904 = vrot.lane.b32.xlu0 %v901, 64
  %v905 = vpop.permute.xlu0 %904
  %v907 = vmul.f32 %v900, %v905
  %909 = vrot.lane.b32.xlu0 %v907, 32
  %v910 = vpop.permute.xlu0 %909
  %v912 = vadd.f32 %v902, %v910
  %v913 = vtanh.pop %v912
  %915 = vrot.lane.b32.xlu0 %v913, 64
  %v916 = vpop.permute.xlu0 %915
  %v918 = vmul.f32 %v900, %v916
  %920 = vrot.lane.b32.xlu0 %v918, 32
  %v921 = vpop.permute.xlu0 %920
  %s923 = scalar_lea.vmem [#allocation3], 48
  %924 = vst.msk [vmem:[%s923] sm:$0xff] %vm191, %v921
  %s925 = scalar_lea.vmem [#allocation2], 56
  %v926 = vld [vmem:[%s925] sm:$0xff]
  %v927 = vsel %vm191, %v921, 0
  %929 = vmatprep.subr.mxu0 0.0
  %930 = vmatpush1.msra.mxu0 %v33
  %931 = vmatprep.subr.mxu0 0.0
  %932 = vmatpush1.msra.mxu0 %v34
  %933 = vmatprep.subr.mxu0 0.0
  %934 = vmatpush1.msra.mxu0 %v35
  %935 = vmatprep.subr.mxu0 0.0
  %936 = vmatpush1.msra.mxu0 %v36
  %937 = vmatprep.subr.mxu0 0.0
  %938 = vmatpush1.msra.mxu0 0.0
  %939 = vmatprep.subr.mxu0 0.0
  %940 = vmatpush1.msra.mxu0 0.0
  %941 = vmatprep.subr.mxu0 0.0
  %942 = vmatpush1.msra.mxu0 0.0
  %943 = vmatprep.subr.mxu0 0.0
  %944 = vmatpush1.msra.mxu0 0.0
  %945 = vmatprep.subr.mxu0 0.0
  %946 = vmatpush1.msra.mxu0 0.0
  %947 = vmatprep.subr.mxu0 0.0
  %948 = vmatpush1.msra.mxu0 0.0
  %949 = vmatprep.subr.mxu0 0.0
  %950 = vmatpush1.msra.mxu0 0.0
  %951 = vmatprep.subr.mxu0 0.0
  %952 = vmatpush1.msra.mxu0 0.0
  %953 = vmatprep.subr.mxu0 0.0
  %954 = vmatpush1.msra.mxu0 0.0
  %955 = vmatprep.subr.mxu0 0.0
  %956 = vmatpush1.msra.mxu0 0.0
  %957 = vmatprep.subr.mxu0 0.0
  %958 = vmatpush1.msra.mxu0 0.0
  %959 = vmatprep.subr.mxu0 0.0
  %960 = vmatpush1.msra.mxu0 0.0
  %961 = vmatprep.subr.mxu0 0.0
  %962 = vmatpush1.msra.mxu0 0.0
  %963 = vmatprep.subr.mxu0 0.0
  %964 = vmatpush1.msra.mxu0 0.0
  %965 = vmatprep.subr.mxu0 0.0
  %966 = vmatpush1.msra.mxu0 0.0
  %967 = vmatprep.subr.mxu0 0.0
  %968 = vmatpush1.msra.mxu0 0.0
  %969 = vmatprep.subr.mxu0 0.0
  %970 = vmatpush1.msra.mxu0 0.0
  %971 = vmatprep.subr.mxu0 0.0
  %972 = vmatpush1.msra.mxu0 0.0
  %973 = vmatprep.subr.mxu0 0.0
  %974 = vmatpush1.msra.mxu0 0.0
  %975 = vmatprep.subr.mxu0 0.0
  %976 = vmatpush1.msra.mxu0 0.0
  %977 = vmatprep.subr.mxu0 0.0
  %978 = vmatpush1.msra.mxu0 0.0
  %979 = vmatprep.subr.mxu0 0.0
  %980 = vmatpush1.msra.mxu0 0.0
  %981 = vmatprep.subr.mxu0 0.0
  %982 = vmatpush1.msra.mxu0 0.0
  %983 = vmatprep.subr.mxu0 0.0
  %984 = vmatpush1.msra.mxu0 0.0
  %985 = vmatprep.subr.mxu0 0.0
  %986 = vmatpush1.msra.mxu0 0.0
  %987 = vmatprep.subr.mxu0 0.0
  %988 = vmatpush1.msra.mxu0 0.0
  %989 = vmatprep.subr.mxu0 0.0
  %990 = vmatpush1.msra.mxu0 0.0
  %991 = vmatprep.subr.mxu0 0.0
  %992 = vmatpush1.msra.mxu0 0.0
  %993 = vmatprep.mubr.f32.mxu0 0.0
  %994 = vmatmul.mubr.f32.gmra.mrb[0].mxu0 %v927
  %v995 = vpop.f32.mrb[0].mxu0
  %v996 = vadd.f32 0.0, %v995
  %v997 = vpop.f32.mrb[0].mxu0
  %998 = vdwg.mxu0
  %v999 = vadd.f32 %v926, %v996
  %v1000 = vxor.u32 %v999, 2147483648
  %v1001 = vmul.f32 %v1000, 1.442695
  %v1002 = vpow.pop %v1001
  %v1003 = vadd.f32 %v1002, 1.0
  %v1004 = vrcp.pop %v1003
  %v1005 = vmul.f32 1.0, %v1004
  %v1006 = vtanh.pop %v999
  %v1007 = vmul.f32 %v1005, %v912
  %1009 = vrot.lane.b32.xlu0 %v1006, 64
  %v1010 = vpop.permute.xlu0 %1009
  %v1012 = vmul.f32 %v1005, %v1010
  %1014 = vrot.lane.b32.xlu0 %v1012, 32
  %v1015 = vpop.permute.xlu0 %1014
  %v1017 = vadd.f32 %v1007, %v1015
  %v1018 = vtanh.pop %v1017
  %1020 = vrot.lane.b32.xlu0 %v1018, 64
  %v1021 = vpop.permute.xlu0 %1020
  %v1023 = vmul.f32 %v1005, %v1021
  %1025 = vrot.lane.b32.xlu0 %v1023, 32
  %v1026 = vpop.permute.xlu0 %1025
  %s1028 = scalar_lea.vmem [#allocation3], 56
  %1029 = vst.msk [vmem:[%s1028] sm:$0xff] %vm191, %v1026
  %v1030 = vld [vmem:[%s4] sm:$0xff]
  %v1031 = vld [vmem:[%s4 + $0x8] sm:$0xff]
  %v1032 = vld [vmem:[%s4 + $0x10] sm:$0xff]
  %v1033 = vld [vmem:[%s4 + $0x18] sm:$0xff]
  %v1034 = vld [vmem:[%s5] sm:$0xff]
  %v1035 = vld [vmem:[%s5 + $0x8] sm:$0xff]
  %v1036 = vld [vmem:[%s5 + $0x10] sm:$0xff]
  %v1037 = vld [vmem:[%s5 + $0x18] sm:$0xff]
  %v1038 = vld [vmem:[%s6] sm:$0x1]
  %v1039 = vld [vmem:[#allocation3] sm:$0xff]
  %v1040 = vld [vmem:[#allocation3 + $0x8] sm:$0xff]
  %v1041 = vld [vmem:[#allocation3 + $0x10] sm:$0xff]
  %v1042 = vld [vmem:[#allocation3 + $0x18] sm:$0xff]
  %v1043 = vld [vmem:[#allocation3 + $0x20] sm:$0xff]
  %v1044 = vld [vmem:[#allocation3 + $0x28] sm:$0xff]
  %v1045 = vld [vmem:[#allocation3 + $0x30] sm:$0xff]
  %v1046 = vld [vmem:[#allocation3 + $0x38] sm:$0xff]
  %v1048 = vlaneseq
  %v1049 = vshrl.u32 %v1048, 7
  %v1050 = vsub.s32 0, %v1049
  %v1051 = vrot.slane %v1038, %v1050
  %v1054 = vsel %vm191, %v1039, 0
  %v1057 = vsel %vm191, %v1040, 0
  %v1060 = vsel %vm191, %v1041, 0
  %v1063 = vsel %vm191, %v1042, 0
  %v1066 = vsel %vm191, %v1043, 0
  %v1069 = vsel %vm191, %v1044, 0
  %v1072 = vsel %vm191, %v1045, 0
  %v1075 = vsel %vm191, %v1046, 0
  %1077 = vmatprep.subr.mxu0 0.0
  %1078 = vmatpush1.msra.mxu0 %v1030
  %1079 = vmatprep.subr.mxu0 0.0
  %1080 = vmatpush1.msra.mxu0 %v1031
  %1081 = vmatprep.subr.mxu0 0.0
  %1082 = vmatpush1.msra.mxu0 %v1032
  %1083 = vmatprep.subr.mxu0 0.0
  %1084 = vmatpush1.msra.mxu0 %v1033
  %1085 = vmatprep.subr.mxu0 0.0
  %1086 = vmatpush1.msra.mxu0 0.0
  %1087 = vmatprep.subr.mxu0 0.0
  %1088 = vmatpush1.msra.mxu0 0.0
  %1089 = vmatprep.subr.mxu0 0.0
  %1090 = vmatpush1.msra.mxu0 0.0
  %1091 = vmatprep.subr.mxu0 0.0
  %1092 = vmatpush1.msra.mxu0 0.0
  %1093 = vmatprep.subr.mxu0 0.0
  %1094 = vmatpush1.msra.mxu0 0.0
  %1095 = vmatprep.subr.mxu0 0.0
  %1096 = vmatpush1.msra.mxu0 0.0
  %1097 = vmatprep.subr.mxu0 0.0
  %1098 = vmatpush1.msra.mxu0 0.0
  %1099 = vmatprep.subr.mxu0 0.0
  %1100 = vmatpush1.msra.mxu0 0.0
  %1101 = vmatprep.subr.mxu0 0.0
  %1102 = vmatpush1.msra.mxu0 0.0
  %1103 = vmatprep.subr.mxu0 0.0
  %1104 = vmatpush1.msra.mxu0 0.0
  %1105 = vmatprep.subr.mxu0 0.0
  %1106 = vmatpush1.msra.mxu0 0.0
  %1107 = vmatprep.subr.mxu0 0.0
  %1108 = vmatpush1.msra.mxu0 0.0
  %1109 = vmatprep.subr.mxu0 0.0
  %1110 = vmatpush1.msra.mxu0 0.0
  %1111 = vmatprep.subr.mxu0 0.0
  %1112 = vmatpush1.msra.mxu0 0.0
  %1113 = vmatprep.subr.mxu0 0.0
  %1114 = vmatpush1.msra.mxu0 0.0
  %1115 = vmatprep.subr.mxu0 0.0
  %1116 = vmatpush1.msra.mxu0 0.0
  %1117 = vmatprep.subr.mxu0 0.0
  %1118 = vmatpush1.msra.mxu0 0.0
  %1119 = vmatprep.subr.mxu0 0.0
  %1120 = vmatpush1.msra.mxu0 0.0
  %1121 = vmatprep.subr.mxu0 0.0
  %1122 = vmatpush1.msra.mxu0 0.0
  %1123 = vmatprep.subr.mxu0 0.0
  %1124 = vmatpush1.msra.mxu0 0.0
  %1125 = vmatprep.subr.mxu0 0.0
  %1126 = vmatpush1.msra.mxu0 0.0
  %1127 = vmatprep.subr.mxu0 0.0
  %1128 = vmatpush1.msra.mxu0 0.0
  %1129 = vmatprep.subr.mxu0 0.0
  %1130 = vmatpush1.msra.mxu0 0.0
  %1131 = vmatprep.subr.mxu0 0.0
  %1132 = vmatpush1.msra.mxu0 0.0
  %1133 = vmatprep.subr.mxu0 0.0
  %1134 = vmatpush1.msra.mxu0 0.0
  %1135 = vmatprep.subr.mxu0 0.0
  %1136 = vmatpush1.msra.mxu0 0.0
  %1137 = vmatprep.subr.mxu0 0.0
  %1138 = vmatpush1.msra.mxu0 0.0
  %1139 = vmatprep.subr.mxu0 0.0
  %1140 = vmatpush1.msra.mxu0 0.0
  %1141 = vmatprep.mubr.f32.mxu0 0.0
  %1142 = vmatmul.mubr.f32.gmra.mrb[0].mxu0 %v1054
  %v1143 = vpop.f32.mrb[0].mxu0
  %v1144 = vadd.f32 %v1051, %v1143
  %v1145 = vpop.f32.mrb[0].mxu0
  %1146 = vmatprep.mubr.f32.mxu0 0.0
  %1147 = vmatmul.mubr.f32.gmra.mrb[0].mxu0 %v1057
  %v1148 = vpop.f32.mrb[0].mxu0
  %v1149 = vadd.f32 %v1051, %v1148
  %v1150 = vpop.f32.mrb[0].mxu0
  %1151 = vmatprep.mubr.f32.mxu0 0.0
  %1152 = vmatmul.mubr.f32.gmra.mrb[0].mxu0 %v1060
  %v1153 = vpop.f32.mrb[0].mxu0
  %v1154 = vadd.f32 %v1051, %v1153
  %v1155 = vpop.f32.mrb[0].mxu0
  %1156 = vmatprep.mubr.f32.mxu0 0.0
  %1157 = vmatmul.mubr.f32.gmra.mrb[0].mxu0 %v1063
  %v1158 = vpop.f32.mrb[0].mxu0
  %v1159 = vadd.f32 %v1051, %v1158
  %v1160 = vpop.f32.mrb[0].mxu0
  %1161 = vmatprep.mubr.f32.mxu0 0.0
  %1162 = vmatmul.mubr.f32.gmra.mrb[0].mxu0 %v1066
  %v1163 = vpop.f32.mrb[0].mxu0
  %v1164 = vadd.f32 %v1051, %v1163
  %v1165 = vpop.f32.mrb[0].mxu0
  %1166 = vmatprep.mubr.f32.mxu0 0.0
  %1167 = vmatmul.mubr.f32.gmra.mrb[0].mxu0 %v1069
  %v1168 = vpop.f32.mrb[0].mxu0
  %v1169 = vadd.f32 %v1051, %v1168
  %v1170 = vpop.f32.mrb[0].mxu0
  %1171 = vmatprep.mubr.f32.mxu0 0.0
  %1172 = vmatmul.mubr.f32.gmra.mrb[0].mxu0 %v1072
  %v1173 = vpop.f32.mrb[0].mxu0
  %v1174 = vadd.f32 %v1051, %v1173
  %v1175 = vpop.f32.mrb[0].mxu0
  %1176 = vmatprep.mubr.f32.mxu0 0.0
  %1177 = vmatmul.mubr.f32.gmra.mrb[0].mxu0 %v1075
  %v1178 = vpop.f32.mrb[0].mxu0
  %v1179 = vadd.f32 %v1051, %v1178
  %v1180 = vpop.f32.mrb[0].mxu0
  %1181 = vdwg.mxu0
  %1182 = vst [vmem:[#allocation2] sm:$0xff] %v1144
  %1183 = vst [vmem:[#allocation2 + $0x8] sm:$0xff] %v1149
  %1184 = vst [vmem:[#allocation2 + $0x10] sm:$0xff] %v1154
  %1185 = vst [vmem:[#allocation2 + $0x18] sm:$0xff] %v1159
  %1186 = vst [vmem:[#allocation2 + $0x20] sm:$0xff] %v1164
  %1187 = vst [vmem:[#allocation2 + $0x28] sm:$0xff] %v1169
  %1188 = vst [vmem:[#allocation2 + $0x30] sm:$0xff] %v1174
  %1189 = vst [vmem:[#allocation2 + $0x38] sm:$0xff] %v1179
  %v1190 = vld [vmem:[#allocation2] sm:$0xff]
  %1191 = vmatprep.subr.mxu0 0.0
  %1192 = vmatpush1.msra.mxu0 %v1034
  %1193 = vmatprep.subr.mxu0 0.0
  %1194 = vmatpush1.msra.mxu0 %v1035
  %1195 = vmatprep.subr.mxu0 0.0
  %1196 = vmatpush1.msra.mxu0 %v1036
  %1197 = vmatprep.subr.mxu0 0.0
  %1198 = vmatpush1.msra.mxu0 %v1037
  %1199 = vmatprep.subr.mxu0 0.0
  %1200 = vmatpush1.msra.mxu0 0.0
  %1201 = vmatprep.subr.mxu0 0.0
  %1202 = vmatpush1.msra.mxu0 0.0
  %1203 = vmatprep.subr.mxu0 0.0
  %1204 = vmatpush1.msra.mxu0 0.0
  %1205 = vmatprep.subr.mxu0 0.0
  %1206 = vmatpush1.msra.mxu0 0.0
  %1207 = vmatprep.subr.mxu0 0.0
  %1208 = vmatpush1.msra.mxu0 0.0
  %1209 = vmatprep.subr.mxu0 0.0
  %1210 = vmatpush1.msra.mxu0 0.0
  %1211 = vmatprep.subr.mxu0 0.0
  %1212 = vmatpush1.msra.mxu0 0.0
  %1213 = vmatprep.subr.mxu0 0.0
  %1214 = vmatpush1.msra.mxu0 0.0
  %1215 = vmatprep.subr.mxu0 0.0
  %1216 = vmatpush1.msra.mxu0 0.0
  %1217 = vmatprep.subr.mxu0 0.0
  %1218 = vmatpush1.msra.mxu0 0.0
  %1219 = vmatprep.subr.mxu0 0.0
  %1220 = vmatpush1.msra.mxu0 0.0
  %1221 = vmatprep.subr.mxu0 0.0
  %1222 = vmatpush1.msra.mxu0 0.0
  %1223 = vmatprep.subr.mxu0 0.0
  %1224 = vmatpush1.msra.mxu0 0.0
  %1225 = vmatprep.subr.mxu0 0.0
  %1226 = vmatpush1.msra.mxu0 0.0
  %1227 = vmatprep.subr.mxu0 0.0
  %1228 = vmatpush1.msra.mxu0 0.0
  %1229 = vmatprep.subr.mxu0 0.0
  %1230 = vmatpush1.msra.mxu0 0.0
  %1231 = vmatprep.subr.mxu0 0.0
  %1232 = vmatpush1.msra.mxu0 0.0
  %1233 = vmatprep.subr.mxu0 0.0
  %1234 = vmatpush1.msra.mxu0 0.0
  %1235 = vmatprep.subr.mxu0 0.0
  %1236 = vmatpush1.msra.mxu0 0.0
  %1237 = vmatprep.subr.mxu0 0.0
  %1238 = vmatpush1.msra.mxu0 0.0
  %1239 = vmatprep.subr.mxu0 0.0
  %1240 = vmatpush1.msra.mxu0 0.0
  %1241 = vmatprep.subr.mxu0 0.0
  %1242 = vmatpush1.msra.mxu0 0.0
  %1243 = vmatprep.subr.mxu0 0.0
  %1244 = vmatpush1.msra.mxu0 0.0
  %1245 = vmatprep.subr.mxu0 0.0
  %1246 = vmatpush1.msra.mxu0 0.0
  %1247 = vmatprep.subr.mxu0 0.0
  %1248 = vmatpush1.msra.mxu0 0.0
  %1249 = vmatprep.subr.mxu0 0.0
  %1250 = vmatpush1.msra.mxu0 0.0
  %1251 = vmatprep.subr.mxu0 0.0
  %1252 = vmatpush1.msra.mxu0 0.0
  %1253 = vmatprep.subr.mxu0 0.0
  %1254 = vmatpush1.msra.mxu0 0.0
  %1255 = vmatprep.mubr.f32.mxu0 0.0
  %1256 = vmatmul.mubr.f32.gmra.mrb[0].mxu0 %v193
  %v1257 = vpop.f32.mrb[0].mxu0
  %v1258 = vadd.f32 0.0, %v1257
  %v1259 = vpop.f32.mrb[0].mxu0
  %1260 = vdwg.mxu0
  %v1261 = vadd.f32 %v1190, %v1258
  %v1262 = vxor.u32 %v1261, 2147483648
  %v1263 = vmul.f32 %v1262, 1.442695
  %v1264 = vpow.pop %v1263
  %v1265 = vadd.f32 %v1264, 1.0
  %v1266 = vrcp.pop %v1265
  %v1267 = vmul.f32 1.0, %v1266
  %v1268 = vtanh.pop %v1261
  %v1269 = vmul.f32 %v1267, 0.0
  %1271 = vrot.lane.b32.xlu0 %v1268, 64
  %v1272 = vpop.permute.xlu0 %1271
  %v1274 = vmul.f32 %v1267, %v1272
  %1276 = vrot.lane.b32.xlu0 %v1274, 32
  %v1277 = vpop.permute.xlu0 %1276
  %v1279 = vadd.f32 %v1269, %v1277
  %v1280 = vtanh.pop %v1279
  %1282 = vrot.lane.b32.xlu0 %v1280, 64
  %v1283 = vpop.permute.xlu0 %1282
  %v1285 = vmul.f32 %v1267, %v1283
  %v1286 = vld [vmem:[%s295] sm:$0xff]
  %1288 = vrot.lane.b32.xlu0 %v1285, 32
  %v1289 = vpop.permute.xlu0 %1288
  %v1290 = vsel %vm191, %v1289, 0
  %1292 = vmatprep.subr.mxu0 0.0
  %1293 = vmatpush1.msra.mxu0 %v1034
  %1294 = vmatprep.subr.mxu0 0.0
  %1295 = vmatpush1.msra.mxu0 %v1035
  %1296 = vmatprep.subr.mxu0 0.0
  %1297 = vmatpush1.msra.mxu0 %v1036
  %1298 = vmatprep.subr.mxu0 0.0
  %1299 = vmatpush1.msra.mxu0 %v1037
  %1300 = vmatprep.subr.mxu0 0.0
  %1301 = vmatpush1.msra.mxu0 0.0
  %1302 = vmatprep.subr.mxu0 0.0
  %1303 = vmatpush1.msra.mxu0 0.0
  %1304 = vmatprep.subr.mxu0 0.0
  %1305 = vmatpush1.msra.mxu0 0.0
  %1306 = vmatprep.subr.mxu0 0.0
  %1307 = vmatpush1.msra.mxu0 0.0
  %1308 = vmatprep.subr.mxu0 0.0
  %1309 = vmatpush1.msra.mxu0 0.0
  %1310 = vmatprep.subr.mxu0 0.0
  %1311 = vmatpush1.msra.mxu0 0.0
  %1312 = vmatprep.subr.mxu0 0.0
  %1313 = vmatpush1.msra.mxu0 0.0
  %1314 = vmatprep.subr.mxu0 0.0
  %1315 = vmatpush1.msra.mxu0 0.0
  %1316 = vmatprep.subr.mxu0 0.0
  %1317 = vmatpush1.msra.mxu0 0.0
  %1318 = vmatprep.subr.mxu0 0.0
  %1319 = vmatpush1.msra.mxu0 0.0
  %1320 = vmatprep.subr.mxu0 0.0
  %1321 = vmatpush1.msra.mxu0 0.0
  %1322 = vmatprep.subr.mxu0 0.0
  %1323 = vmatpush1.msra.mxu0 0.0
  %1324 = vmatprep.subr.mxu0 0.0
  %1325 = vmatpush1.msra.mxu0 0.0
  %1326 = vmatprep.subr.mxu0 0.0
  %1327 = vmatpush1.msra.mxu0 0.0
  %1328 = vmatprep.subr.mxu0 0.0
  %1329 = vmatpush1.msra.mxu0 0.0
  %1330 = vmatprep.subr.mxu0 0.0
  %1331 = vmatpush1.msra.mxu0 0.0
  %1332 = vmatprep.subr.mxu0 0.0
  %1333 = vmatpush1.msra.mxu0 0.0
  %1334 = vmatprep.subr.mxu0 0.0
  %1335 = vmatpush1.msra.mxu0 0.0
  %1336 = vmatprep.subr.mxu0 0.0
  %1337 = vmatpush1.msra.mxu0 0.0
  %1338 = vmatprep.subr.mxu0 0.0
  %1339 = vmatpush1.msra.mxu0 0.0
  %1340 = vmatprep.subr.mxu0 0.0
  %1341 = vmatpush1.msra.mxu0 0.0
  %1342 = vmatprep.subr.mxu0 0.0
  %1343 = vmatpush1.msra.mxu0 0.0
  %1344 = vmatprep.subr.mxu0 0.0
  %1345 = vmatpush1.msra.mxu0 0.0
  %1346 = vmatprep.subr.mxu0 0.0
  %1347 = vmatpush1.msra.mxu0 0.0
  %1348 = vmatprep.subr.mxu0 0.0
  %1349 = vmatpush1.msra.mxu0 0.0
  %1350 = vmatprep.subr.mxu0 0.0
  %1351 = vmatpush1.msra.mxu0 0.0
  %1352 = vmatprep.subr.mxu0 0.0
  %1353 = vmatpush1.msra.mxu0 0.0
  %1354 = vmatprep.subr.mxu0 0.0
  %1355 = vmatpush1.msra.mxu0 0.0
  %1356 = vmatprep.mubr.f32.mxu0 0.0
  %1357 = vmatmul.mubr.f32.gmra.mrb[0].mxu0 %v1290
  %v1358 = vpop.f32.mrb[0].mxu0
  %v1359 = vadd.f32 0.0, %v1358
  %v1360 = vpop.f32.mrb[0].mxu0
  %1361 = vdwg.mxu0
  %v1362 = vadd.f32 %v1286, %v1359
  %v1363 = vxor.u32 %v1362, 2147483648
  %v1364 = vmul.f32 %v1363, 1.442695
  %v1365 = vpow.pop %v1364
  %v1366 = vadd.f32 %v1365, 1.0
  %v1367 = vrcp.pop %v1366
  %v1368 = vmul.f32 1.0, %v1367
  %v1369 = vtanh.pop %v1362
  %v1370 = vmul.f32 %v1368, %v1279
  %1372 = vrot.lane.b32.xlu0 %v1369, 64
  %v1373 = vpop.permute.xlu0 %1372
  %v1375 = vmul.f32 %v1368, %v1373
  %1377 = vrot.lane.b32.xlu0 %v1375, 32
  %v1378 = vpop.permute.xlu0 %1377
  %v1380 = vadd.f32 %v1370, %v1378
  %v1381 = vtanh.pop %v1380
  %1383 = vrot.lane.b32.xlu0 %v1381, 64
  %v1384 = vpop.permute.xlu0 %1383
  %v1386 = vmul.f32 %v1368, %v1384
  %v1387 = vld [vmem:[%s400] sm:$0xff]
  %1389 = vrot.lane.b32.xlu0 %v1386, 32
  %v1390 = vpop.permute.xlu0 %1389
  %v1391 = vsel %vm191, %v1390, 0
  %1393 = vmatprep.subr.mxu0 0.0
  %1394 = vmatpush1.msra.mxu0 %v1034
  %1395 = vmatprep.subr.mxu0 0.0
  %1396 = vmatpush1.msra.mxu0 %v1035
  %1397 = vmatprep.subr.mxu0 0.0
  %1398 = vmatpush1.msra.mxu0 %v1036
  %1399 = vmatprep.subr.mxu0 0.0
  %1400 = vmatpush1.msra.mxu0 %v1037
  %1401 = vmatprep.subr.mxu0 0.0
  %1402 = vmatpush1.msra.mxu0 0.0
  %1403 = vmatprep.subr.mxu0 0.0
  %1404 = vmatpush1.msra.mxu0 0.0
  %1405 = vmatprep.subr.mxu0 0.0
  %1406 = vmatpush1.msra.mxu0 0.0
  %1407 = vmatprep.subr.mxu0 0.0
  %1408 = vmatpush1.msra.mxu0 0.0
  %1409 = vmatprep.subr.mxu0 0.0
  %1410 = vmatpush1.msra.mxu0 0.0
  %1411 = vmatprep.subr.mxu0 0.0
  %1412 = vmatpush1.msra.mxu0 0.0
  %1413 = vmatprep.subr.mxu0 0.0
  %1414 = vmatpush1.msra.mxu0 0.0
  %1415 = vmatprep.subr.mxu0 0.0
  %1416 = vmatpush1.msra.mxu0 0.0
  %1417 = vmatprep.subr.mxu0 0.0
  %1418 = vmatpush1.msra.mxu0 0.0
  %1419 = vmatprep.subr.mxu0 0.0
  %1420 = vmatpush1.msra.mxu0 0.0
  %1421 = vmatprep.subr.mxu0 0.0
  %1422 = vmatpush1.msra.mxu0 0.0
  %1423 = vmatprep.subr.mxu0 0.0
  %1424 = vmatpush1.msra.mxu0 0.0
  %1425 = vmatprep.subr.mxu0 0.0
  %1426 = vmatpush1.msra.mxu0 0.0
  %1427 = vmatprep.subr.mxu0 0.0
  %1428 = vmatpush1.msra.mxu0 0.0
  %1429 = vmatprep.subr.mxu0 0.0
  %1430 = vmatpush1.msra.mxu0 0.0
  %1431 = vmatprep.subr.mxu0 0.0
  %1432 = vmatpush1.msra.mxu0 0.0
  %1433 = vmatprep.subr.mxu0 0.0
  %1434 = vmatpush1.msra.mxu0 0.0
  %1435 = vmatprep.subr.mxu0 0.0
  %1436 = vmatpush1.msra.mxu0 0.0
  %1437 = vmatprep.subr.mxu0 0.0
  %1438 = vmatpush1.msra.mxu0 0.0
  %1439 = vmatprep.subr.mxu0 0.0
  %1440 = vmatpush1.msra.mxu0 0.0
  %1441 = vmatprep.subr.mxu0 0.0
  %1442 = vmatpush1.msra.mxu0 0.0
  %1443 = vmatprep.subr.mxu0 0.0
  %1444 = vmatpush1.msra.mxu0 0.0
  %1445 = vmatprep.subr.mxu0 0.0
  %1446 = vmatpush1.msra.mxu0 0.0
  %1447 = vmatprep.subr.mxu0 0.0
  %1448 = vmatpush1.msra.mxu0 0.0
  %1449 = vmatprep.subr.mxu0 0.0
  %1450 = vmatpush1.msra.mxu0 0.0
  %1451 = vmatprep.subr.mxu0 0.0
  %1452 = vmatpush1.msra.mxu0 0.0
  %1453 = vmatprep.subr.mxu0 0.0
  %1454 = vmatpush1.msra.mxu0 0.0
  %1455 = vmatprep.subr.mxu0 0.0
  %1456 = vmatpush1.msra.mxu0 0.0
  %1457 = vmatprep.mubr.f32.mxu0 0.0
  %1458 = vmatmul.mubr.f32.gmra.mrb[0].mxu0 %v1391
  %v1459 = vpop.f32.mrb[0].mxu0
  %v1460 = vadd.f32 0.0, %v1459
  %v1461 = vpop.f32.mrb[0].mxu0
  %1462 = vdwg.mxu0
  %v1463 = vadd.f32 %v1387, %v1460
  %v1464 = vxor.u32 %v1463, 2147483648
  %v1465 = vmul.f32 %v1464, 1.442695
  %v1466 = vpow.pop %v1465
  %v1467 = vadd.f32 %v1466, 1.0
  %v1468 = vrcp.pop %v1467
  %v1469 = vmul.f32 1.0, %v1468
  %v1470 = vtanh.pop %v1463
  %v1471 = vmul.f32 %v1469, %v1380
  %1473 = vrot.lane.b32.xlu0 %v1470, 64
  %v1474 = vpop.permute.xlu0 %1473
  %v1476 = vmul.f32 %v1469, %v1474
  %1478 = vrot.lane.b32.xlu0 %v1476, 32
  %v1479 = vpop.permute.xlu0 %1478
  %v1481 = vadd.f32 %v1471, %v1479
  %v1482 = vtanh.pop %v1481
  %1484 = vrot.lane.b32.xlu0 %v1482, 64
  %v1485 = vpop.permute.xlu0 %1484
  %v1487 = vmul.f32 %v1469, %v1485
  %v1488 = vld [vmem:[%s505] sm:$0xff]
  %1490 = vrot.lane.b32.xlu0 %v1487, 32
  %v1491 = vpop.permute.xlu0 %1490
  %v1492 = vsel %vm191, %v1491, 0
  %1494 = vmatprep.subr.mxu0 0.0
  %1495 = vmatpush1.msra.mxu0 %v1034
  %1496 = vmatprep.subr.mxu0 0.0
  %1497 = vmatpush1.msra.mxu0 %v1035
  %1498 = vmatprep.subr.mxu0 0.0
  %1499 = vmatpush1.msra.mxu0 %v1036
  %1500 = vmatprep.subr.mxu0 0.0
  %1501 = vmatpush1.msra.mxu0 %v1037
  %1502 = vmatprep.subr.mxu0 0.0
  %1503 = vmatpush1.msra.mxu0 0.0
  %1504 = vmatprep.subr.mxu0 0.0
  %1505 = vmatpush1.msra.mxu0 0.0
  %1506 = vmatprep.subr.mxu0 0.0
  %1507 = vmatpush1.msra.mxu0 0.0
  %1508 = vmatprep.subr.mxu0 0.0
  %1509 = vmatpush1.msra.mxu0 0.0
  %1510 = vmatprep.subr.mxu0 0.0
  %1511 = vmatpush1.msra.mxu0 0.0
  %1512 = vmatprep.subr.mxu0 0.0
  %1513 = vmatpush1.msra.mxu0 0.0
  %1514 = vmatprep.subr.mxu0 0.0
  %1515 = vmatpush1.msra.mxu0 0.0
  %1516 = vmatprep.subr.mxu0 0.0
  %1517 = vmatpush1.msra.mxu0 0.0
  %1518 = vmatprep.subr.mxu0 0.0
  %1519 = vmatpush1.msra.mxu0 0.0
  %1520 = vmatprep.subr.mxu0 0.0
  %1521 = vmatpush1.msra.mxu0 0.0
  %1522 = vmatprep.subr.mxu0 0.0
  %1523 = vmatpush1.msra.mxu0 0.0
  %1524 = vmatprep.subr.mxu0 0.0
  %1525 = vmatpush1.msra.mxu0 0.0
  %1526 = vmatprep.subr.mxu0 0.0
  %1527 = vmatpush1.msra.mxu0 0.0
  %1528 = vmatprep.subr.mxu0 0.0
  %1529 = vmatpush1.msra.mxu0 0.0
  %1530 = vmatprep.subr.mxu0 0.0
  %1531 = vmatpush1.msra.mxu0 0.0
  %1532 = vmatprep.subr.mxu0 0.0
  %1533 = vmatpush1.msra.mxu0 0.0
  %1534 = vmatprep.subr.mxu0 0.0
  %1535 = vmatpush1.msra.mxu0 0.0
  %1536 = vmatprep.subr.mxu0 0.0
  %1537 = vmatpush1.msra.mxu0 0.0
  %1538 = vmatprep.subr.mxu0 0.0
  %1539 = vmatpush1.msra.mxu0 0.0
  %1540 = vmatprep.subr.mxu0 0.0
  %1541 = vmatpush1.msra.mxu0 0.0
  %1542 = vmatprep.subr.mxu0 0.0
  %1543 = vmatpush1.msra.mxu0 0.0
  %1544 = vmatprep.subr.mxu0 0.0
  %1545 = vmatpush1.msra.mxu0 0.0
  %1546 = vmatprep.subr.mxu0 0.0
  %1547 = vmatpush1.msra.mxu0 0.0
  %1548 = vmatprep.subr.mxu0 0.0
  %1549 = vmatpush1.msra.mxu0 0.0
  %1550 = vmatprep.subr.mxu0 0.0
  %1551 = vmatpush1.msra.mxu0 0.0
  %1552 = vmatprep.subr.mxu0 0.0
  %1553 = vmatpush1.msra.mxu0 0.0
  %1554 = vmatprep.subr.mxu0 0.0
  %1555 = vmatpush1.msra.mxu0 0.0
  %1556 = vmatprep.subr.mxu0 0.0
  %1557 = vmatpush1.msra.mxu0 0.0
  %1558 = vmatprep.mubr.f32.mxu0 0.0
  %1559 = vmatmul.mubr.f32.gmra.mrb[0].mxu0 %v1492
  %v1560 = vpop.f32.mrb[0].mxu0
  %v1561 = vadd.f32 0.0, %v1560
  %v1562 = vpop.f32.mrb[0].mxu0
  %1563 = vdwg.mxu0
  %v1564 = vadd.f32 %v1488, %v1561
  %v1565 = vxor.u32 %v1564, 2147483648
  %v1566 = vmul.f32 %v1565, 1.442695
  %v1567 = vpow.pop %v1566
  %v1568 = vadd.f32 %v1567, 1.0
  %v1569 = vrcp.pop %v1568
  %v1570 = vmul.f32 1.0, %v1569
  %v1571 = vtanh.pop %v1564
  %v1572 = vmul.f32 %v1570, %v1481
  %1574 = vrot.lane.b32.xlu0 %v1571, 64
  %v1575 = vpop.permute.xlu0 %1574
  %v1577 = vmul.f32 %v1570, %v1575
  %1579 = vrot.lane.b32.xlu0 %v1577, 32
  %v1580 = vpop.permute.xlu0 %1579
  %v1582 = vadd.f32 %v1572, %v1580
  %v1583 = vtanh.pop %v1582
  %1585 = vrot.lane.b32.xlu0 %v1583, 64
  %v1586 = vpop.permute.xlu0 %1585
  %v1588 = vmul.f32 %v1570, %v1586
  %v1589 = vld [vmem:[%s610] sm:$0xff]
  %1591 = vrot.lane.b32.xlu0 %v1588, 32
  %v1592 = vpop.permute.xlu0 %1591
  %v1593 = vsel %vm191, %v1592, 0
  %1595 = vmatprep.subr.mxu0 0.0
  %1596 = vmatpush1.msra.mxu0 %v1034
  %1597 = vmatprep.subr.mxu0 0.0
  %1598 = vmatpush1.msra.mxu0 %v1035
  %1599 = vmatprep.subr.mxu0 0.0
  %1600 = vmatpush1.msra.mxu0 %v1036
  %1601 = vmatprep.subr.mxu0 0.0
  %1602 = vmatpush1.msra.mxu0 %v1037
  %1603 = vmatprep.subr.mxu0 0.0
  %1604 = vmatpush1.msra.mxu0 0.0
  %1605 = vmatprep.subr.mxu0 0.0
  %1606 = vmatpush1.msra.mxu0 0.0
  %1607 = vmatprep.subr.mxu0 0.0
  %1608 = vmatpush1.msra.mxu0 0.0
  %1609 = vmatprep.subr.mxu0 0.0
  %1610 = vmatpush1.msra.mxu0 0.0
  %1611 = vmatprep.subr.mxu0 0.0
  %1612 = vmatpush1.msra.mxu0 0.0
  %1613 = vmatprep.subr.mxu0 0.0
  %1614 = vmatpush1.msra.mxu0 0.0
  %1615 = vmatprep.subr.mxu0 0.0
  %1616 = vmatpush1.msra.mxu0 0.0
  %1617 = vmatprep.subr.mxu0 0.0
  %1618 = vmatpush1.msra.mxu0 0.0
  %1619 = vmatprep.subr.mxu0 0.0
  %1620 = vmatpush1.msra.mxu0 0.0
  %1621 = vmatprep.subr.mxu0 0.0
  %1622 = vmatpush1.msra.mxu0 0.0
  %1623 = vmatprep.subr.mxu0 0.0
  %1624 = vmatpush1.msra.mxu0 0.0
  %1625 = vmatprep.subr.mxu0 0.0
  %1626 = vmatpush1.msra.mxu0 0.0
  %1627 = vmatprep.subr.mxu0 0.0
  %1628 = vmatpush1.msra.mxu0 0.0
  %1629 = vmatprep.subr.mxu0 0.0
  %1630 = vmatpush1.msra.mxu0 0.0
  %1631 = vmatprep.subr.mxu0 0.0
  %1632 = vmatpush1.msra.mxu0 0.0
  %1633 = vmatprep.subr.mxu0 0.0
  %1634 = vmatpush1.msra.mxu0 0.0
  %1635 = vmatprep.subr.mxu0 0.0
  %1636 = vmatpush1.msra.mxu0 0.0
  %1637 = vmatprep.subr.mxu0 0.0
  %1638 = vmatpush1.msra.mxu0 0.0
  %1639 = vmatprep.subr.mxu0 0.0
  %1640 = vmatpush1.msra.mxu0 0.0
  %1641 = vmatprep.subr.mxu0 0.0
  %1642 = vmatpush1.msra.mxu0 0.0
  %1643 = vmatprep.subr.mxu0 0.0
  %1644 = vmatpush1.msra.mxu0 0.0
  %1645 = vmatprep.subr.mxu0 0.0
  %1646 = vmatpush1.msra.mxu0 0.0
  %1647 = vmatprep.subr.mxu0 0.0
  %1648 = vmatpush1.msra.mxu0 0.0
  %1649 = vmatprep.subr.mxu0 0.0
  %1650 = vmatpush1.msra.mxu0 0.0
  %1651 = vmatprep.subr.mxu0 0.0
  %1652 = vmatpush1.msra.mxu0 0.0
  %1653 = vmatprep.subr.mxu0 0.0
  %1654 = vmatpush1.msra.mxu0 0.0
  %1655 = vmatprep.subr.mxu0 0.0
  %1656 = vmatpush1.msra.mxu0 0.0
  %1657 = vmatprep.subr.mxu0 0.0
  %1658 = vmatpush1.msra.mxu0 0.0
  %1659 = vmatprep.mubr.f32.mxu0 0.0
  %1660 = vmatmul.mubr.f32.gmra.mrb[0].mxu0 %v1593
  %v1661 = vpop.f32.mrb[0].mxu0
  %v1662 = vadd.f32 0.0, %v1661
  %v1663 = vpop.f32.mrb[0].mxu0
  %1664 = vdwg.mxu0
  %v1665 = vadd.f32 %v1589, %v1662
  %v1666 = vxor.u32 %v1665, 2147483648
  %v1667 = vmul.f32 %v1666, 1.442695
  %v1668 = vpow.pop %v1667
  %v1669 = vadd.f32 %v1668, 1.0
  %v1670 = vrcp.pop %v1669
  %v1671 = vmul.f32 1.0, %v1670
  %v1672 = vtanh.pop %v1665
  %v1673 = vmul.f32 %v1671, %v1582
  %1675 = vrot.lane.b32.xlu0 %v1672, 64
  %v1676 = vpop.permute.xlu0 %1675
  %v1678 = vmul.f32 %v1671, %v1676
  %1680 = vrot.lane.b32.xlu0 %v1678, 32
  %v1681 = vpop.permute.xlu0 %1680
  %v1683 = vadd.f32 %v1673, %v1681
  %v1684 = vtanh.pop %v1683
  %1686 = vrot.lane.b32.xlu0 %v1684, 64
  %v1687 = vpop.permute.xlu0 %1686
  %v1689 = vmul.f32 %v1671, %v1687
  %v1690 = vld [vmem:[%s715] sm:$0xff]
  %1692 = vrot.lane.b32.xlu0 %v1689, 32
  %v1693 = vpop.permute.xlu0 %1692
  %v1694 = vsel %vm191, %v1693, 0
  %1696 = vmatprep.subr.mxu0 0.0
  %1697 = vmatpush1.msra.mxu0 %v1034
  %1698 = vmatprep.subr.mxu0 0.0
  %1699 = vmatpush1.msra.mxu0 %v1035
  %1700 = vmatprep.subr.mxu0 0.0
  %1701 = vmatpush1.msra.mxu0 %v1036
  %1702 = vmatprep.subr.mxu0 0.0
  %1703 = vmatpush1.msra.mxu0 %v1037
  %1704 = vmatprep.subr.mxu0 0.0
  %1705 = vmatpush1.msra.mxu0 0.0
  %1706 = vmatprep.subr.mxu0 0.0
  %1707 = vmatpush1.msra.mxu0 0.0
  %1708 = vmatprep.subr.mxu0 0.0
  %1709 = vmatpush1.msra.mxu0 0.0
  %1710 = vmatprep.subr.mxu0 0.0
  %1711 = vmatpush1.msra.mxu0 0.0
  %1712 = vmatprep.subr.mxu0 0.0
  %1713 = vmatpush1.msra.mxu0 0.0
  %1714 = vmatprep.subr.mxu0 0.0
  %1715 = vmatpush1.msra.mxu0 0.0
  %1716 = vmatprep.subr.mxu0 0.0
  %1717 = vmatpush1.msra.mxu0 0.0
  %1718 = vmatprep.subr.mxu0 0.0
  %1719 = vmatpush1.msra.mxu0 0.0
  %1720 = vmatprep.subr.mxu0 0.0
  %1721 = vmatpush1.msra.mxu0 0.0
  %1722 = vmatprep.subr.mxu0 0.0
  %1723 = vmatpush1.msra.mxu0 0.0
  %1724 = vmatprep.subr.mxu0 0.0
  %1725 = vmatpush1.msra.mxu0 0.0
  %1726 = vmatprep.subr.mxu0 0.0
  %1727 = vmatpush1.msra.mxu0 0.0
  %1728 = vmatprep.subr.mxu0 0.0
  %1729 = vmatpush1.msra.mxu0 0.0
  %1730 = vmatprep.subr.mxu0 0.0
  %1731 = vmatpush1.msra.mxu0 0.0
  %1732 = vmatprep.subr.mxu0 0.0
  %1733 = vmatpush1.msra.mxu0 0.0
  %1734 = vmatprep.subr.mxu0 0.0
  %1735 = vmatpush1.msra.mxu0 0.0
  %1736 = vmatprep.subr.mxu0 0.0
  %1737 = vmatpush1.msra.mxu0 0.0
  %1738 = vmatprep.subr.mxu0 0.0
  %1739 = vmatpush1.msra.mxu0 0.0
  %1740 = vmatprep.subr.mxu0 0.0
  %1741 = vmatpush1.msra.mxu0 0.0
  %1742 = vmatprep.subr.mxu0 0.0
  %1743 = vmatpush1.msra.mxu0 0.0
  %1744 = vmatprep.subr.mxu0 0.0
  %1745 = vmatpush1.msra.mxu0 0.0
  %1746 = vmatprep.subr.mxu0 0.0
  %1747 = vmatpush1.msra.mxu0 0.0
  %1748 = vmatprep.subr.mxu0 0.0
  %1749 = vmatpush1.msra.mxu0 0.0
  %1750 = vmatprep.subr.mxu0 0.0
  %1751 = vmatpush1.msra.mxu0 0.0
  %1752 = vmatprep.subr.mxu0 0.0
  %1753 = vmatpush1.msra.mxu0 0.0
  %1754 = vmatprep.subr.mxu0 0.0
  %1755 = vmatpush1.msra.mxu0 0.0
  %1756 = vmatprep.subr.mxu0 0.0
  %1757 = vmatpush1.msra.mxu0 0.0
  %1758 = vmatprep.subr.mxu0 0.0
  %1759 = vmatpush1.msra.mxu0 0.0
  %1760 = vmatprep.mubr.f32.mxu0 0.0
  %1761 = vmatmul.mubr.f32.gmra.mrb[0].mxu0 %v1694
  %v1762 = vpop.f32.mrb[0].mxu0
  %v1763 = vadd.f32 0.0, %v1762
  %v1764 = vpop.f32.mrb[0].mxu0
  %1765 = vdwg.mxu0
  %v1766 = vadd.f32 %v1690, %v1763
  %v1767 = vxor.u32 %v1766, 2147483648
  %v1768 = vmul.f32 %v1767, 1.442695
  %v1769 = vpow.pop %v1768
  %v1770 = vadd.f32 %v1769, 1.0
  %v1771 = vrcp.pop %v1770
  %v1772 = vmul.f32 1.0, %v1771
  %v1773 = vtanh.pop %v1766
  %v1774 = vmul.f32 %v1772, %v1683
  %1776 = vrot.lane.b32.xlu0 %v1773, 64
  %v1777 = vpop.permute.xlu0 %1776
  %v1779 = vmul.f32 %v1772, %v1777
  %1781 = vrot.lane.b32.xlu0 %v1779, 32
  %v1782 = vpop.permute.xlu0 %1781
  %v1784 = vadd.f32 %v1774, %v1782
  %v1785 = vtanh.pop %v1784
  %1787 = vrot.lane.b32.xlu0 %v1785, 64
  %v1788 = vpop.permute.xlu0 %1787
  %v1790 = vmul.f32 %v1772, %v1788
  %v1791 = vld [vmem:[%s820] sm:$0xff]
  %1793 = vrot.lane.b32.xlu0 %v1790, 32
  %v1794 = vpop.permute.xlu0 %1793
  %v1795 = vsel %vm191, %v1794, 0
  %1797 = vmatprep.subr.mxu0 0.0
  %1798 = vmatpush1.msra.mxu0 %v1034
  %1799 = vmatprep.subr.mxu0 0.0
  %1800 = vmatpush1.msra.mxu0 %v1035
  %1801 = vmatprep.subr.mxu0 0.0
  %1802 = vmatpush1.msra.mxu0 %v1036
  %1803 = vmatprep.subr.mxu0 0.0
  %1804 = vmatpush1.msra.mxu0 %v1037
  %1805 = vmatprep.subr.mxu0 0.0
  %1806 = vmatpush1.msra.mxu0 0.0
  %1807 = vmatprep.subr.mxu0 0.0
  %1808 = vmatpush1.msra.mxu0 0.0
  %1809 = vmatprep.subr.mxu0 0.0
  %1810 = vmatpush1.msra.mxu0 0.0
  %1811 = vmatprep.subr.mxu0 0.0
  %1812 = vmatpush1.msra.mxu0 0.0
  %1813 = vmatprep.subr.mxu0 0.0
  %1814 = vmatpush1.msra.mxu0 0.0
  %1815 = vmatprep.subr.mxu0 0.0
  %1816 = vmatpush1.msra.mxu0 0.0
  %1817 = vmatprep.subr.mxu0 0.0
  %1818 = vmatpush1.msra.mxu0 0.0
  %1819 = vmatprep.subr.mxu0 0.0
  %1820 = vmatpush1.msra.mxu0 0.0
  %1821 = vmatprep.subr.mxu0 0.0
  %1822 = vmatpush1.msra.mxu0 0.0
  %1823 = vmatprep.subr.mxu0 0.0
  %1824 = vmatpush1.msra.mxu0 0.0
  %1825 = vmatprep.subr.mxu0 0.0
  %1826 = vmatpush1.msra.mxu0 0.0
  %1827 = vmatprep.subr.mxu0 0.0
  %1828 = vmatpush1.msra.mxu0 0.0
  %1829 = vmatprep.subr.mxu0 0.0
  %1830 = vmatpush1.msra.mxu0 0.0
  %1831 = vmatprep.subr.mxu0 0.0
  %1832 = vmatpush1.msra.mxu0 0.0
  %1833 = vmatprep.subr.mxu0 0.0
  %1834 = vmatpush1.msra.mxu0 0.0
  %1835 = vmatprep.subr.mxu0 0.0
  %1836 = vmatpush1.msra.mxu0 0.0
  %1837 = vmatprep.subr.mxu0 0.0
  %1838 = vmatpush1.msra.mxu0 0.0
  %1839 = vmatprep.subr.mxu0 0.0
  %1840 = vmatpush1.msra.mxu0 0.0
  %1841 = vmatprep.subr.mxu0 0.0
  %1842 = vmatpush1.msra.mxu0 0.0
  %1843 = vmatprep.subr.mxu0 0.0
  %1844 = vmatpush1.msra.mxu0 0.0
  %1845 = vmatprep.subr.mxu0 0.0
  %1846 = vmatpush1.msra.mxu0 0.0
  %1847 = vmatprep.subr.mxu0 0.0
  %1848 = vmatpush1.msra.mxu0 0.0
  %1849 = vmatprep.subr.mxu0 0.0
  %1850 = vmatpush1.msra.mxu0 0.0
  %1851 = vmatprep.subr.mxu0 0.0
  %1852 = vmatpush1.msra.mxu0 0.0
  %1853 = vmatprep.subr.mxu0 0.0
  %1854 = vmatpush1.msra.mxu0 0.0
  %1855 = vmatprep.subr.mxu0 0.0
  %1856 = vmatpush1.msra.mxu0 0.0
  %1857 = vmatprep.subr.mxu0 0.0
  %1858 = vmatpush1.msra.mxu0 0.0
  %1859 = vmatprep.subr.mxu0 0.0
  %1860 = vmatpush1.msra.mxu0 0.0
  %1861 = vmatprep.mubr.f32.mxu0 0.0
  %1862 = vmatmul.mubr.f32.gmra.mrb[0].mxu0 %v1795
  %v1863 = vpop.f32.mrb[0].mxu0
  %v1864 = vadd.f32 0.0, %v1863
  %v1865 = vpop.f32.mrb[0].mxu0
  %1866 = vdwg.mxu0
  %v1867 = vadd.f32 %v1791, %v1864
  %v1868 = vxor.u32 %v1867, 2147483648
  %v1869 = vmul.f32 %v1868, 1.442695
  %v1870 = vpow.pop %v1869
  %v1871 = vadd.f32 %v1870, 1.0
  %v1872 = vrcp.pop %v1871
  %v1873 = vmul.f32 1.0, %v1872
  %v1874 = vtanh.pop %v1867
  %v1875 = vmul.f32 %v1873, %v1784
  %1877 = vrot.lane.b32.xlu0 %v1874, 64
  %v1878 = vpop.permute.xlu0 %1877
  %v1880 = vmul.f32 %v1873, %v1878
  %1882 = vrot.lane.b32.xlu0 %v1880, 32
  %v1883 = vpop.permute.xlu0 %1882
  %v1885 = vadd.f32 %v1875, %v1883
  %v1886 = vtanh.pop %v1885
  %1888 = vrot.lane.b32.xlu0 %v1886, 64
  %v1889 = vpop.permute.xlu0 %1888
  %v1891 = vmul.f32 %v1873, %v1889
  %v1892 = vld [vmem:[%s925] sm:$0xff]
  %1894 = vrot.lane.b32.xlu0 %v1891, 32
  %v1895 = vpop.permute.xlu0 %1894
  %v1896 = vsel %vm191, %v1895, 0
  %1898 = vmatprep.subr.mxu0 0.0
  %1899 = vmatpush1.msra.mxu0 %v1034
  %1900 = vmatprep.subr.mxu0 0.0
  %1901 = vmatpush1.msra.mxu0 %v1035
  %1902 = vmatprep.subr.mxu0 0.0
  %1903 = vmatpush1.msra.mxu0 %v1036
  %1904 = vmatprep.subr.mxu0 0.0
  %1905 = vmatpush1.msra.mxu0 %v1037
  %1906 = vmatprep.subr.mxu0 0.0
  %1907 = vmatpush1.msra.mxu0 0.0
  %1908 = vmatprep.subr.mxu0 0.0
  %1909 = vmatpush1.msra.mxu0 0.0
  %1910 = vmatprep.subr.mxu0 0.0
  %1911 = vmatpush1.msra.mxu0 0.0
  %1912 = vmatprep.subr.mxu0 0.0
  %1913 = vmatpush1.msra.mxu0 0.0
  %1914 = vmatprep.subr.mxu0 0.0
  %1915 = vmatpush1.msra.mxu0 0.0
  %1916 = vmatprep.subr.mxu0 0.0
  %1917 = vmatpush1.msra.mxu0 0.0
  %1918 = vmatprep.subr.mxu0 0.0
  %1919 = vmatpush1.msra.mxu0 0.0
  %1920 = vmatprep.subr.mxu0 0.0
  %1921 = vmatpush1.msra.mxu0 0.0
  %1922 = vmatprep.subr.mxu0 0.0
  %1923 = vmatpush1.msra.mxu0 0.0
  %1924 = vmatprep.subr.mxu0 0.0
  %1925 = vmatpush1.msra.mxu0 0.0
  %1926 = vmatprep.subr.mxu0 0.0
  %1927 = vmatpush1.msra.mxu0 0.0
  %1928 = vmatprep.subr.mxu0 0.0
  %1929 = vmatpush1.msra.mxu0 0.0
  %1930 = vmatprep.subr.mxu0 0.0
  %1931 = vmatpush1.msra.mxu0 0.0
  %1932 = vmatprep.subr.mxu0 0.0
  %1933 = vmatpush1.msra.mxu0 0.0
  %1934 = vmatprep.subr.mxu0 0.0
  %1935 = vmatpush1.msra.mxu0 0.0
  %1936 = vmatprep.subr.mxu0 0.0
  %1937 = vmatpush1.msra.mxu0 0.0
  %1938 = vmatprep.subr.mxu0 0.0
  %1939 = vmatpush1.msra.mxu0 0.0
  %1940 = vmatprep.subr.mxu0 0.0
  %1941 = vmatpush1.msra.mxu0 0.0
  %1942 = vmatprep.subr.mxu0 0.0
  %1943 = vmatpush1.msra.mxu0 0.0
  %1944 = vmatprep.subr.mxu0 0.0
  %1945 = vmatpush1.msra.mxu0 0.0
  %1946 = vmatprep.subr.mxu0 0.0
  %1947 = vmatpush1.msra.mxu0 0.0
  %1948 = vmatprep.subr.mxu0 0.0
  %1949 = vmatpush1.msra.mxu0 0.0
  %1950 = vmatprep.subr.mxu0 0.0
  %1951 = vmatpush1.msra.mxu0 0.0
  %1952 = vmatprep.subr.mxu0 0.0
  %1953 = vmatpush1.msra.mxu0 0.0
  %1954 = vmatprep.subr.mxu0 0.0
  %1955 = vmatpush1.msra.mxu0 0.0
  %1956 = vmatprep.subr.mxu0 0.0
  %1957 = vmatpush1.msra.mxu0 0.0
  %1958 = vmatprep.subr.mxu0 0.0
  %1959 = vmatpush1.msra.mxu0 0.0
  %1960 = vmatprep.subr.mxu0 0.0
  %1961 = vmatpush1.msra.mxu0 0.0
  %1962 = vmatprep.mubr.f32.mxu0 0.0
  %1963 = vmatmul.mubr.f32.gmra.mrb[0].mxu0 %v1896
  %v1964 = vpop.f32.mrb[0].mxu0
  %v1965 = vadd.f32 0.0, %v1964
  %v1966 = vpop.f32.mrb[0].mxu0
  %1967 = vdwg.mxu0
  %v1968 = vadd.f32 %v1892, %v1965
  %v1969 = vxor.u32 %v1968, 2147483648
  %v1970 = vmul.f32 %v1969, 1.442695
  %v1971 = vpow.pop %v1970
  %v1972 = vadd.f32 %v1971, 1.0
  %v1973 = vrcp.pop %v1972
  %v1974 = vmul.f32 1.0, %v1973
  %v1975 = vtanh.pop %v1968
  %v1976 = vmul.f32 %v1974, %v1885
  %1978 = vrot.lane.b32.xlu0 %v1975, 64
  %v1979 = vpop.permute.xlu0 %1978
  %v1981 = vmul.f32 %v1974, %v1979
  %1983 = vrot.lane.b32.xlu0 %v1981, 32
  %v1984 = vpop.permute.xlu0 %1983
  %v1986 = vadd.f32 %v1976, %v1984
  %v1987 = vtanh.pop %v1986
  %1989 = vrot.lane.b32.xlu0 %v1987, 64
  %v1990 = vpop.permute.xlu0 %1989
  %v1992 = vmul.f32 %v1974, %v1990
  %v1993 = vld [vmem:[%s7] sm:$0xff]
  %v1994 = vld [vmem:[%s7 + $0x8] sm:$0xff]
  %v1995 = vld [vmem:[%s7 + $0x10] sm:$0xff]
  %v1996 = vld [vmem:[%s7 + $0x18] sm:$0xff]
  %v1997 = vld [vmem:[%s8] sm:$0x1]
  %v1999 = vlaneseq
  %v2000 = vshrl.u32 %v1999, 7
  %v2001 = vsub.s32 0, %v2000
  %v2002 = vrot.slane %v1997, %v2001
  %2005 = vrot.lane.b32.xlu0 %v1992, 32
  %v2006 = vpop.permute.xlu0 %2005
  %v2007 = vsel %vm191, %v2006, 0
  %2009 = vmatprep.subr.mxu0 0.0
  %2010 = vmatpush1.msra.mxu0 %v1993
  %2011 = vmatprep.subr.mxu0 0.0
  %2012 = vmatpush1.msra.mxu0 %v1994
  %2013 = vmatprep.subr.mxu0 0.0
  %2014 = vmatpush1.msra.mxu0 %v1995
  %2015 = vmatprep.subr.mxu0 0.0
  %2016 = vmatpush1.msra.mxu0 %v1996
  %2017 = vmatprep.subr.mxu0 0.0
  %2018 = vmatpush1.msra.mxu0 0.0
  %2019 = vmatprep.subr.mxu0 0.0
  %2020 = vmatpush1.msra.mxu0 0.0
  %2021 = vmatprep.subr.mxu0 0.0
  %2022 = vmatpush1.msra.mxu0 0.0
  %2023 = vmatprep.subr.mxu0 0.0
  %2024 = vmatpush1.msra.mxu0 0.0
  %2025 = vmatprep.subr.mxu0 0.0
  %2026 = vmatpush1.msra.mxu0 0.0
  %2027 = vmatprep.subr.mxu0 0.0
  %2028 = vmatpush1.msra.mxu0 0.0
  %2029 = vmatprep.subr.mxu0 0.0
  %2030 = vmatpush1.msra.mxu0 0.0
  %2031 = vmatprep.subr.mxu0 0.0
  %2032 = vmatpush1.msra.mxu0 0.0
  %2033 = vmatprep.subr.mxu0 0.0
  %2034 = vmatpush1.msra.mxu0 0.0
  %2035 = vmatprep.subr.mxu0 0.0
  %2036 = vmatpush1.msra.mxu0 0.0
  %2037 = vmatprep.subr.mxu0 0.0
  %2038 = vmatpush1.msra.mxu0 0.0
  %2039 = vmatprep.subr.mxu0 0.0
  %2040 = vmatpush1.msra.mxu0 0.0
  %2041 = vmatprep.subr.mxu0 0.0
  %2042 = vmatpush1.msra.mxu0 0.0
  %2043 = vmatprep.subr.mxu0 0.0
  %2044 = vmatpush1.msra.mxu0 0.0
  %2045 = vmatprep.subr.mxu0 0.0
  %2046 = vmatpush1.msra.mxu0 0.0
  %2047 = vmatprep.subr.mxu0 0.0
  %2048 = vmatpush1.msra.mxu0 0.0
  %2049 = vmatprep.subr.mxu0 0.0
  %2050 = vmatpush1.msra.mxu0 0.0
  %2051 = vmatprep.subr.mxu0 0.0
  %2052 = vmatpush1.msra.mxu0 0.0
  %2053 = vmatprep.subr.mxu0 0.0
  %2054 = vmatpush1.msra.mxu0 0.0
  %2055 = vmatprep.subr.mxu0 0.0
  %2056 = vmatpush1.msra.mxu0 0.0
  %2057 = vmatprep.subr.mxu0 0.0
  %2058 = vmatpush1.msra.mxu0 0.0
  %2059 = vmatprep.subr.mxu0 0.0
  %2060 = vmatpush1.msra.mxu0 0.0
  %2061 = vmatprep.subr.mxu0 0.0
  %2062 = vmatpush1.msra.mxu0 0.0
  %2063 = vmatprep.subr.mxu0 0.0
  %2064 = vmatpush1.msra.mxu0 0.0
  %2065 = vmatprep.subr.mxu0 0.0
  %2066 = vmatpush1.msra.mxu0 0.0
  %2067 = vmatprep.subr.mxu0 0.0
  %2068 = vmatpush1.msra.mxu0 0.0
  %2069 = vmatprep.subr.mxu0 0.0
  %2070 = vmatpush1.msra.mxu0 0.0
  %2071 = vmatprep.subr.mxu0 0.0
  %2072 = vmatpush1.msra.mxu0 0.0
  %2073 = vmatprep.mubr.f32.mxu0 0.0
  %2074 = vmatmul.mubr.f32.gmra.mrb[0].mxu0 %v2007
  %v2075 = vpop.f32.mrb[0].mxu0
  %v2076 = vadd.f32 %v2002, %v2075
  %v2077 = vpop.f32.mrb[0].mxu0
  %2078 = vdwg.mxu0
  %vm2079 = vcmask 31744
  %2080 = vst.msk [vmem:[%s9] sm:$0xff] %vm2079, %v2076
  // Predicated region
  $region38: #{tpu_custom_call.1} parent=0 // pred_check
    _
  $region39: #{tpu_custom_call.1} parent=0 // pred_check_branch
    %2082 = sbr.rel (0) target = $region41
  $region40: #{tpu_custom_call.1} parent=0 // pred_region
    _
  $region41: #{tpu_custom_call.1} parent=0 // pred_fallthru
    _
  // Predicated region
  $region42: #{tpu_custom_call.1} parent=0 // pred_check
    _
  $region43: #{tpu_custom_call.1} parent=0 // pred_check_branch
    %2084 = sbr.rel (0) target = $region45
  $region44: #{tpu_custom_call.1} parent=0 // pred_region
    _
  $region45: #{tpu_custom_call.1} parent=0 // pred_fallthru
    _

</llo_original>
